<compile_context>
chip_gen: v7x
topology: tpu7x:2x2x1
jax: 0.10.0
libtpu: 0.0.40
codegen_flags: <defaults>
</compile_context>

<pallas_src>
import math

import jax
import jax.numpy as jnp
from jax import lax
from jax.experimental import pallas as pl
from jax.experimental.pallas import tpu as pltpu


def _round_up(n, m):
    return ((n + m - 1) // m) * m


def _lstm_layer_kernel(len_ref, gx_ref, whh_ref, out_ref, hn_ref, cn_ref,
                       h_sc, c_sc):
    """One (batch_tile, time_block) grid step: TT recurrent LSTM steps."""
    ti = pl.program_id(1)
    n_tt = pl.num_programs(1)
    TT = gx_ref.shape[0]
    Hp = whh_ref.shape[0]

    @pl.when(ti == 0)
    def _():
        h_sc[...] = jnp.zeros_like(h_sc)
        c_sc[...] = jnp.zeros_like(c_sc)

    lengths = len_ref[...]            # (BT, 1) int32
    whh = whh_ref[...]                # (Hp, 4*Hp) bf16, VMEM-resident
    t0 = ti * TT

    def step(s, carry):
        h0, c0 = carry                # fp32 carries
        # precomputed x@W_ih(+bias) block + recurrent h@W_hh (bf16 MXU, f32 acc)
        gates = gx_ref[s].astype(jnp.float32) + jnp.dot(
            h0.astype(jnp.bfloat16), whh, preferred_element_type=jnp.float32)
        f = gates[:, 0 * Hp:1 * Hp]   # lane-aligned slices (Hp % 128 == 0)
        i = gates[:, 1 * Hp:2 * Hp]
        o = gates[:, 2 * Hp:3 * Hp]
        g = gates[:, 3 * Hp:4 * Hp]
        c1 = jax.nn.sigmoid(f) * c0 + jax.nn.sigmoid(i) * jnp.tanh(g)
        h1 = jax.nn.sigmoid(o) * jnp.tanh(c1)
        keep = (t0 + s) < lengths     # (BT, 1) bool
        h_next = jnp.where(keep, h1, h0)
        c_next = jnp.where(keep, c1, c0)
        out_ref[s] = h_next
        return (h_next, c_next)

    hN, cN = lax.fori_loop(0, TT, step, (h_sc[...], c_sc[...]), unroll=True)
    h_sc[...] = hN
    c_sc[...] = cN

    @pl.when(ti == n_tt - 1)
    def _():
        hn_ref[...] = hN
        cn_ref[...] = cN


def lstm_layer(x, w_ih, w_hh, bias, lengths, *, time_block=16):
    """One LSTM layer over a time-major (T, B, D) sequence.

    Returns (output (T,B,H), h_n (B,H), c_n (B,H)).
    """
    T, B, D = x.shape
    H = w_hh.shape[0]

    Hp = _round_up(H, 128)                      # lane-aligned gate width
    Bp = _round_up(B, 8)                        # sublane-aligned batch
    if Bp > 128:
        Bp = _round_up(Bp, 128)
    BT = min(Bp, 128)                           # batch tile (parallel axis)
    TT = min(time_block, T)                     # timesteps per grid step
    Tp = _round_up(T, TT)

    # ---- Hoisted input projection: one big bf16 MXU matmul over all T*B rows.
    gx = jnp.dot(x.reshape(T * B, D).astype(jnp.bfloat16),
                 w_ih.astype(jnp.bfloat16),
                 preferred_element_type=jnp.float32)
    gx = gx + bias[None, :].astype(jnp.float32)
    gx = gx.reshape(T, B, 4, H)                 # pad each gate to Hp lanes
    gx = jnp.pad(gx, ((0, Tp - T), (0, Bp - B), (0, 0), (0, Hp - H)))
    gx = gx.reshape(Tp, Bp, 4 * Hp).astype(jnp.bfloat16)

    # Per-gate-padded recurrent weight, bf16 for the MXU.
    whh = jnp.pad(w_hh.reshape(H, 4, H), ((0, Hp - H), (0, 0), (0, Hp - H)))
    whh = whh.reshape(Hp, 4 * Hp).astype(jnp.bfloat16)

    # Padded batch rows get length 0 -> their state stays zero.
    len2d = jnp.pad(lengths.astype(jnp.int32), (0, Bp - B)).reshape(Bp, 1)

    out_shapes = (
        jax.ShapeDtypeStruct((Tp, Bp, Hp), jnp.float32),   # per-step hidden
        jax.ShapeDtypeStruct((Bp, Hp), jnp.float32),       # final h
        jax.ShapeDtypeStruct((Bp, Hp), jnp.float32),       # final c
    )

    out, hn, cn = pl.pallas_call(
        _lstm_layer_kernel,
        out_shape=out_shapes,
        grid_spec=pltpu.PrefetchScalarGridSpec(
            num_scalar_prefetch=0,
            grid=(Bp // BT, Tp // TT),
            in_specs=[
                pl.BlockSpec((BT, 1), lambda bi, ti: (bi, 0)),          # lengths
                pl.BlockSpec((TT, BT, 4 * Hp), lambda bi, ti: (ti, bi, 0)),  # x@W_ih
                pl.BlockSpec((Hp, 4 * Hp), lambda bi, ti: (0, 0)),      # W_hh
            ],
            out_specs=[
                pl.BlockSpec((TT, BT, Hp), lambda bi, ti: (ti, bi, 0)),
                pl.BlockSpec((BT, Hp), lambda bi, ti: (bi, 0)),
                pl.BlockSpec((BT, Hp), lambda bi, ti: (bi, 0)),
            ],
            scratch_shapes=[
                pltpu.VMEM((BT, Hp), jnp.float32),   # h carry (fp32)
                pltpu.VMEM((BT, Hp), jnp.float32),   # c carry (fp32)
            ],
        ),
        compiler_params=pltpu.CompilerParams(
            dimension_semantics=("parallel", "arbitrary")),
    )(len2d, gx, whh)

    return out[:T, :B, :H], hn[:B, :H], cn[:B, :H]


def init_rnn_params(key, input_size, hidden_size, num_layers):
    """Deterministic init mirroring LSTMCell.reset_parameters (bias = 0)."""
    stdv = 1.0 / math.sqrt(hidden_size)
    params = []
    for layer in range(num_layers):
        d_in = input_size if layer == 0 else hidden_size
        key, k1, k2 = jax.random.split(key, 3)
        w_ih = jax.random.uniform(k1, (d_in, 4 * hidden_size),
                                  minval=-stdv, maxval=stdv, dtype=jnp.float32)
        w_hh = jax.random.uniform(k2, (hidden_size, 4 * hidden_size),
                                  minval=-stdv, maxval=stdv, dtype=jnp.float32)
        b = jnp.zeros((4 * hidden_size,), dtype=jnp.float32)
        params.append((w_ih, w_hh, b))
    return params


def rnn_forward(x, params, lengths):
    """RNN(LSTMCell, num_layers) forward. x: (T, B, input_size) time-major.

    Returns (output, (h_n, c_n)) matching the PyTorch module, including its
    quirk that c_n is built from the per-layer final h states.
    """
    layer_input = x
    h_finals = []
    for (w_ih, w_hh, b) in params:
        layer_output, h_n_l, _c_n_l = lstm_layer(layer_input, w_ih, w_hh, b,
                                                 lengths)
        layer_input = layer_output
        h_finals.append(h_n_l)
    output = layer_input
    h_n = jnp.stack(h_finals, axis=0)
    c_n = jnp.stack(h_finals, axis=0)   # matches PyTorch source (uses x[0] twice)
    return output, (h_n, c_n)


def _rnn_reference(x, params, lengths):
    """Pure-JAX fp32 reference of the PyTorch module (for validation)."""
    T, B, _ = x.shape
    layer_in = x
    h_finals = []
    for (w_ih, w_hh, b) in params:
        H = w_hh.shape[0]
        h = jnp.zeros((B, H), jnp.float32)
        c = jnp.zeros((B, H), jnp.float32)
        outs = []
        for t in range(T):
            gates = layer_in[t] @ w_ih + h @ w_hh + b
            f, i, o, g = jnp.split(gates, 4, axis=1)
            c1 = jax.nn.sigmoid(f) * c + jax.nn.sigmoid(i) * jnp.tanh(g)
            h1 = jax.nn.sigmoid(o) * jnp.tanh(c1)
            mask = (t < lengths).astype(jnp.float32)[:, None]
            h = h1 * mask + h * (1.0 - mask)
            c = c1 * mask + c * (1.0 - mask)
            outs.append(h)
        layer_in = jnp.stack(outs, axis=0)
        h_finals.append(h)
    hn = jnp.stack(h_finals, axis=0)
    return layer_in, (hn, hn)


if __name__ == "__main__":
    T, B, D, H, L = 8, 2, 16, 32, 2

    key = jax.random.PRNGKey(0)
    key, kx = jax.random.split(key)
    x = jax.random.normal(kx, (T, B, D), dtype=jnp.float32)   # (seq, batch, D)
    lengths = jnp.array([T, T - 3], dtype=jnp.int32)          # per-batch lengths

    params = init_rnn_params(key, D, H, L)

    fwd = jax.jit(rnn_forward)
    output, (h_n, c_n) = fwd(x, params, lengths)
    jax.block_until_ready((output, h_n, c_n))

    assert output.shape == (T, B, H)
    assert h_n.shape == (L, B, H) and c_n.shape == (L, B, H)

    out_ref, (h_ref, c_ref) = _rnn_reference(x, params, lengths)
    assert float(jnp.max(jnp.abs(output - out_ref))) < 5e-2
    assert float(jnp.max(jnp.abs(h_n - h_ref))) < 5e-2
    assert float(jnp.max(jnp.abs(c_n - c_ref))) < 5e-2

    print("KERNEL_OK")
</pallas_src>

<mosaic_0001>
module attributes {stable_mosaic.version = 11 : i64} {
  func.func @_lstm_layer_kernel(%arg0: i32, %arg1: i32, %arg2: memref<8x1xi32, #tpu.memory_space<vmem>>, %arg3: memref<8x8x512xbf16, #tpu.memory_space<vmem>>, %arg4: memref<128x512xbf16, #tpu.memory_space<vmem>>, %arg5: memref<8x8x128xf32, #tpu.memory_space<vmem>>, %arg6: memref<8x128xf32, #tpu.memory_space<vmem>>, %arg7: memref<8x128xf32, #tpu.memory_space<vmem>>, %arg8: memref<8x128xf32, #tpu.memory_space<vmem>>, %arg9: memref<8x128xf32, #tpu.memory_space<vmem>>) attributes {dimension_semantics = [#tpu.dimension_semantics<parallel>, #tpu.dimension_semantics<arbitrary>], iteration_bounds = array<i64: 1, 1>, scalar_prefetch = 0 : i64, scratch_operands = 2 : i64, tpu.core_type = #tpu.core_type<tc>, window_params = [{transform_indices = @transform_0, window_bounds = array<i64: 8, 1>}, {transform_indices = @transform_1, window_bounds = array<i64: 8, 8, 512>}, {pipeline_mode = #tpu.pipeline_mode<synchronous>, transform_indices = @transform_2, window_bounds = array<i64: 128, 512>}, {transform_indices = @transform_3, window_bounds = array<i64: 8, 8, 128>}, {transform_indices = @transform_4, window_bounds = array<i64: 8, 128>}, {transform_indices = @transform_5, window_bounds = array<i64: 8, 128>}]} {
    %c0_i32 = arith.constant 0 : i32
    %0 = arith.cmpi eq, %arg1, %c0_i32 : i32
    %1 = arith.extui %0 : i1 to i32
    %c0_i32_0 = arith.constant 0 : i32
    %2 = arith.cmpi ne, %1, %c0_i32_0 : i32
    scf.if %2 {
      %cst_79 = arith.constant 0.000000e+00 : f32
      %373 = vector.broadcast %cst_79 : f32 to vector<8x128xf32>
      %c0_80 = arith.constant 0 : index
      %c0_81 = arith.constant 0 : index
      %374 = vector.load %arg8[%c0_80, %c0_81] : memref<8x128xf32, #tpu.memory_space<vmem>>, vector<8x128xf32>
      tpu.vector_store %arg8[%c0_80, %c0_81], %373 {strides = array<i32>} : memref<8x128xf32, #tpu.memory_space<vmem>>, vector<8x128xf32>,
      %cst_82 = arith.constant 0.000000e+00 : f32
      %375 = vector.broadcast %cst_82 : f32 to vector<8x128xf32>
      %c0_83 = arith.constant 0 : index
      %c0_84 = arith.constant 0 : index
      %376 = vector.load %arg9[%c0_83, %c0_84] : memref<8x128xf32, #tpu.memory_space<vmem>>, vector<8x128xf32>
      tpu.vector_store %arg9[%c0_83, %c0_84], %375 {strides = array<i32>} : memref<8x128xf32, #tpu.memory_space<vmem>>, vector<8x128xf32>,
    } else {
    }
    %c0 = arith.constant 0 : index
    %c0_1 = arith.constant 0 : index
    %3 = vector.load %arg2[%c0, %c0_1] : memref<8x1xi32, #tpu.memory_space<vmem>>, vector<8x1xi32>
    %c0_2 = arith.constant 0 : index
    %c0_3 = arith.constant 0 : index
    %4 = vector.load %arg4[%c0_2, %c0_3] : memref<128x512xbf16, #tpu.memory_space<vmem>>, vector<128x512xbf16>
    %c8_i32 = arith.constant 8 : i32
    %5 = arith.muli %arg1, %c8_i32 : i32
    %c0_4 = arith.constant 0 : index
    %c0_5 = arith.constant 0 : index
    %6 = vector.load %arg8[%c0_4, %c0_5] : memref<8x128xf32, #tpu.memory_space<vmem>>, vector<8x128xf32>
    %c0_6 = arith.constant 0 : index
    %c0_7 = arith.constant 0 : index
    %7 = vector.load %arg9[%c0_6, %c0_7] : memref<8x128xf32, #tpu.memory_space<vmem>>, vector<8x128xf32>
    %c0_i32_8 = arith.constant 0 : i32
    %8 = arith.index_cast %c0_i32_8 : i32 to index
    %c0_9 = arith.constant 0 : index
    %c0_10 = arith.constant 0 : index
    %9 = vector.load %arg3[%8, %c0_9, %c0_10] : memref<8x8x512xbf16, #tpu.memory_space<vmem>>, vector<1x8x512xbf16>
    %10 = vector.shape_cast %9 : vector<1x8x512xbf16> to vector<8x512xbf16>
    %11 = arith.extf %10 : vector<8x512xbf16> to vector<8x512xf32>
    %12 = arith.truncf %6 : vector<8x128xf32> to vector<8x128xbf16>
    %cst = arith.constant dense<0.000000e+00> : vector<8x512xf32>
    %13 = tpu.matmul %12, %4, %cst {dimension_numbers = #tpu.dot_dimension_numbers<[1], [0], [0], [1], [0, 0, 1, 1], [], []>} : vector<8x128xbf16>, vector<128x512xbf16>, vector<8x512xf32> -> vector<8x512xf32>
    %14 = arith.addf %11, %13 : vector<8x512xf32>
    %15 = vector.extract_strided_slice %14 {offsets = [0, 0], sizes = [8, 128], strides = [1, 1]} : vector<8x512xf32> to vector<8x128xf32>
    %16 = vector.extract_strided_slice %14 {offsets = [0, 128], sizes = [8, 128], strides = [1, 1]} : vector<8x512xf32> to vector<8x128xf32>
    %17 = vector.extract_strided_slice %14 {offsets = [0, 256], sizes = [8, 128], strides = [1, 1]} : vector<8x512xf32> to vector<8x128xf32>
    %18 = vector.extract_strided_slice %14 {offsets = [0, 384], sizes = [8, 128], strides = [1, 1]} : vector<8x512xf32> to vector<8x128xf32>
    %19 = arith.negf %15 : vector<8x128xf32>
    %20 = math.exp %19 : vector<8x128xf32>
    %cst_11 = arith.constant 1.000000e+00 : f32
    %21 = vector.broadcast %cst_11 : f32 to vector<8x128xf32>
    %22 = arith.addf %21, %20 : vector<8x128xf32>
    %23 = arith.divf %21, %22 : vector<8x128xf32>
    %24 = arith.mulf %23, %7 : vector<8x128xf32>
    %25 = arith.negf %16 : vector<8x128xf32>
    %26 = math.exp %25 : vector<8x128xf32>
    %cst_12 = arith.constant 1.000000e+00 : f32
    %27 = vector.broadcast %cst_12 : f32 to vector<8x128xf32>
    %28 = arith.addf %27, %26 : vector<8x128xf32>
    %29 = arith.divf %27, %28 : vector<8x128xf32>
    %30 = math.tanh %18 : vector<8x128xf32>
    %31 = arith.mulf %29, %30 : vector<8x128xf32>
    %32 = arith.addf %24, %31 : vector<8x128xf32>
    %33 = arith.negf %17 : vector<8x128xf32>
    %34 = math.exp %33 : vector<8x128xf32>
    %cst_13 = arith.constant 1.000000e+00 : f32
    %35 = vector.broadcast %cst_13 : f32 to vector<8x128xf32>
    %36 = arith.addf %35, %34 : vector<8x128xf32>
    %37 = arith.divf %35, %36 : vector<8x128xf32>
    %38 = math.tanh %32 : vector<8x128xf32>
    %39 = arith.mulf %37, %38 : vector<8x128xf32>
    %40 = arith.addi %5, %c0_i32_8 : i32
    %41 = vector.broadcast %40 : i32 to vector<8x1xi32>
    %42 = arith.cmpi slt, %41, %3 : vector<8x1xi32>
    %43 = vector.shape_cast %42 : vector<8x1xi1> to vector<8x1xi1>
    %44 = vector.broadcast %43 : vector<8x1xi1> to vector<8x128xi1>
    %45 = arith.select %44, %39, %6 : vector<8x128xi1>, vector<8x128xf32>
    %46 = vector.shape_cast %42 : vector<8x1xi1> to vector<8x1xi1>
    %47 = vector.broadcast %46 : vector<8x1xi1> to vector<8x128xi1>
    %48 = arith.select %47, %32, %7 : vector<8x128xi1>, vector<8x128xf32>
    %49 = arith.index_cast %c0_i32_8 : i32 to index
    %c0_14 = arith.constant 0 : index
    %c0_15 = arith.constant 0 : index
    %50 = vector.load %arg5[%49, %c0_14, %c0_15] : memref<8x8x128xf32, #tpu.memory_space<vmem>>, vector<1x8x128xf32>
    %51 = vector.shape_cast %50 : vector<1x8x128xf32> to vector<8x128xf32>
    %52 = vector.shape_cast %45 : vector<8x128xf32> to vector<1x8x128xf32>
    tpu.vector_store %arg5[%49, %c0_14, %c0_15], %52 {strides = array<i32>} : memref<8x8x128xf32, #tpu.memory_space<vmem>>, vector<1x8x128xf32>,
    %c1_i32 = arith.constant 1 : i32
    %53 = arith.index_cast %c1_i32 : i32 to index
    %c0_16 = arith.constant 0 : index
    %c0_17 = arith.constant 0 : index
    %54 = vector.load %arg3[%53, %c0_16, %c0_17] : memref<8x8x512xbf16, #tpu.memory_space<vmem>>, vector<1x8x512xbf16>
    %55 = vector.shape_cast %54 : vector<1x8x512xbf16> to vector<8x512xbf16>
    %56 = arith.extf %55 : vector<8x512xbf16> to vector<8x512xf32>
    %57 = arith.truncf %45 : vector<8x128xf32> to vector<8x128xbf16>
    %cst_18 = arith.constant dense<0.000000e+00> : vector<8x512xf32>
    %58 = tpu.matmul %57, %4, %cst_18 {dimension_numbers = #tpu.dot_dimension_numbers<[1], [0], [0], [1], [0, 0, 1, 1], [], []>} : vector<8x128xbf16>, vector<128x512xbf16>, vector<8x512xf32> -> vector<8x512xf32>
    %59 = arith.addf %56, %58 : vector<8x512xf32>
    %60 = vector.extract_strided_slice %59 {offsets = [0, 0], sizes = [8, 128], strides = [1, 1]} : vector<8x512xf32> to vector<8x128xf32>
    %61 = vector.extract_strided_slice %59 {offsets = [0, 128], sizes = [8, 128], strides = [1, 1]} : vector<8x512xf32> to vector<8x128xf32>
    %62 = vector.extract_strided_slice %59 {offsets = [0, 256], sizes = [8, 128], strides = [1, 1]} : vector<8x512xf32> to vector<8x128xf32>
    %63 = vector.extract_strided_slice %59 {offsets = [0, 384], sizes = [8, 128], strides = [1, 1]} : vector<8x512xf32> to vector<8x128xf32>
    %64 = arith.negf %60 : vector<8x128xf32>
    %65 = math.exp %64 : vector<8x128xf32>
    %cst_19 = arith.constant 1.000000e+00 : f32
    %66 = vector.broadcast %cst_19 : f32 to vector<8x128xf32>
    %67 = arith.addf %66, %65 : vector<8x128xf32>
    %68 = arith.divf %66, %67 : vector<8x128xf32>
    %69 = arith.mulf %68, %48 : vector<8x128xf32>
    %70 = arith.negf %61 : vector<8x128xf32>
    %71 = math.exp %70 : vector<8x128xf32>
    %cst_20 = arith.constant 1.000000e+00 : f32
    %72 = vector.broadcast %cst_20 : f32 to vector<8x128xf32>
    %73 = arith.addf %72, %71 : vector<8x128xf32>
    %74 = arith.divf %72, %73 : vector<8x128xf32>
    %75 = math.tanh %63 : vector<8x128xf32>
    %76 = arith.mulf %74, %75 : vector<8x128xf32>
    %77 = arith.addf %69, %76 : vector<8x128xf32>
    %78 = arith.negf %62 : vector<8x128xf32>
    %79 = math.exp %78 : vector<8x128xf32>
    %cst_21 = arith.constant 1.000000e+00 : f32
    %80 = vector.broadcast %cst_21 : f32 to vector<8x128xf32>
    %81 = arith.addf %80, %79 : vector<8x128xf32>
    %82 = arith.divf %80, %81 : vector<8x128xf32>
    %83 = math.tanh %77 : vector<8x128xf32>
    %84 = arith.mulf %82, %83 : vector<8x128xf32>
    %85 = arith.addi %5, %c1_i32 : i32
    %86 = vector.broadcast %85 : i32 to vector<8x1xi32>
    %87 = arith.cmpi slt, %86, %3 : vector<8x1xi32>
    %88 = vector.shape_cast %87 : vector<8x1xi1> to vector<8x1xi1>
    %89 = vector.broadcast %88 : vector<8x1xi1> to vector<8x128xi1>
    %90 = arith.select %89, %84, %45 : vector<8x128xi1>, vector<8x128xf32>
    %91 = vector.shape_cast %87 : vector<8x1xi1> to vector<8x1xi1>
    %92 = vector.broadcast %91 : vector<8x1xi1> to vector<8x128xi1>
    %93 = arith.select %92, %77, %48 : vector<8x128xi1>, vector<8x128xf32>
    %94 = arith.index_cast %c1_i32 : i32 to index
    %c0_22 = arith.constant 0 : index
    %c0_23 = arith.constant 0 : index
    %95 = vector.load %arg5[%94, %c0_22, %c0_23] : memref<8x8x128xf32, #tpu.memory_space<vmem>>, vector<1x8x128xf32>
    %96 = vector.shape_cast %95 : vector<1x8x128xf32> to vector<8x128xf32>
    %97 = vector.shape_cast %90 : vector<8x128xf32> to vector<1x8x128xf32>
    tpu.vector_store %arg5[%94, %c0_22, %c0_23], %97 {strides = array<i32>} : memref<8x8x128xf32, #tpu.memory_space<vmem>>, vector<1x8x128xf32>,
    %c2_i32 = arith.constant 2 : i32
    %98 = arith.index_cast %c2_i32 : i32 to index
    %c0_24 = arith.constant 0 : index
    %c0_25 = arith.constant 0 : index
    %99 = vector.load %arg3[%98, %c0_24, %c0_25] : memref<8x8x512xbf16, #tpu.memory_space<vmem>>, vector<1x8x512xbf16>
    %100 = vector.shape_cast %99 : vector<1x8x512xbf16> to vector<8x512xbf16>
    %101 = arith.extf %100 : vector<8x512xbf16> to vector<8x512xf32>
    %102 = arith.truncf %90 : vector<8x128xf32> to vector<8x128xbf16>
    %cst_26 = arith.constant dense<0.000000e+00> : vector<8x512xf32>
    %103 = tpu.matmul %102, %4, %cst_26 {dimension_numbers = #tpu.dot_dimension_numbers<[1], [0], [0], [1], [0, 0, 1, 1], [], []>} : vector<8x128xbf16>, vector<128x512xbf16>, vector<8x512xf32> -> vector<8x512xf32>
    %104 = arith.addf %101, %103 : vector<8x512xf32>
    %105 = vector.extract_strided_slice %104 {offsets = [0, 0], sizes = [8, 128], strides = [1, 1]} : vector<8x512xf32> to vector<8x128xf32>
    %106 = vector.extract_strided_slice %104 {offsets = [0, 128], sizes = [8, 128], strides = [1, 1]} : vector<8x512xf32> to vector<8x128xf32>
    %107 = vector.extract_strided_slice %104 {offsets = [0, 256], sizes = [8, 128], strides = [1, 1]} : vector<8x512xf32> to vector<8x128xf32>
    %108 = vector.extract_strided_slice %104 {offsets = [0, 384], sizes = [8, 128], strides = [1, 1]} : vector<8x512xf32> to vector<8x128xf32>
    %109 = arith.negf %105 : vector<8x128xf32>
    %110 = math.exp %109 : vector<8x128xf32>
    %cst_27 = arith.constant 1.000000e+00 : f32
    %111 = vector.broadcast %cst_27 : f32 to vector<8x128xf32>
    %112 = arith.addf %111, %110 : vector<8x128xf32>
    %113 = arith.divf %111, %112 : vector<8x128xf32>
    %114 = arith.mulf %113, %93 : vector<8x128xf32>
    %115 = arith.negf %106 : vector<8x128xf32>
    %116 = math.exp %115 : vector<8x128xf32>
    %cst_28 = arith.constant 1.000000e+00 : f32
    %117 = vector.broadcast %cst_28 : f32 to vector<8x128xf32>
    %118 = arith.addf %117, %116 : vector<8x128xf32>
    %119 = arith.divf %117, %118 : vector<8x128xf32>
    %120 = math.tanh %108 : vector<8x128xf32>
    %121 = arith.mulf %119, %120 : vector<8x128xf32>
    %122 = arith.addf %114, %121 : vector<8x128xf32>
    %123 = arith.negf %107 : vector<8x128xf32>
    %124 = math.exp %123 : vector<8x128xf32>
    %cst_29 = arith.constant 1.000000e+00 : f32
    %125 = vector.broadcast %cst_29 : f32 to vector<8x128xf32>
    %126 = arith.addf %125, %124 : vector<8x128xf32>
    %127 = arith.divf %125, %126 : vector<8x128xf32>
    %128 = math.tanh %122 : vector<8x128xf32>
    %129 = arith.mulf %127, %128 : vector<8x128xf32>
    %130 = arith.addi %5, %c2_i32 : i32
    %131 = vector.broadcast %130 : i32 to vector<8x1xi32>
    %132 = arith.cmpi slt, %131, %3 : vector<8x1xi32>
    %133 = vector.shape_cast %132 : vector<8x1xi1> to vector<8x1xi1>
    %134 = vector.broadcast %133 : vector<8x1xi1> to vector<8x128xi1>
    %135 = arith.select %134, %129, %90 : vector<8x128xi1>, vector<8x128xf32>
    %136 = vector.shape_cast %132 : vector<8x1xi1> to vector<8x1xi1>
    %137 = vector.broadcast %136 : vector<8x1xi1> to vector<8x128xi1>
    %138 = arith.select %137, %122, %93 : vector<8x128xi1>, vector<8x128xf32>
    %139 = arith.index_cast %c2_i32 : i32 to index
    %c0_30 = arith.constant 0 : index
    %c0_31 = arith.constant 0 : index
    %140 = vector.load %arg5[%139, %c0_30, %c0_31] : memref<8x8x128xf32, #tpu.memory_space<vmem>>, vector<1x8x128xf32>
    %141 = vector.shape_cast %140 : vector<1x8x128xf32> to vector<8x128xf32>
    %142 = vector.shape_cast %135 : vector<8x128xf32> to vector<1x8x128xf32>
    tpu.vector_store %arg5[%139, %c0_30, %c0_31], %142 {strides = array<i32>} : memref<8x8x128xf32, #tpu.memory_space<vmem>>, vector<1x8x128xf32>,
    %c3_i32 = arith.constant 3 : i32
    %143 = arith.index_cast %c3_i32 : i32 to index
    %c0_32 = arith.constant 0 : index
    %c0_33 = arith.constant 0 : index
    %144 = vector.load %arg3[%143, %c0_32, %c0_33] : memref<8x8x512xbf16, #tpu.memory_space<vmem>>, vector<1x8x512xbf16>
    %145 = vector.shape_cast %144 : vector<1x8x512xbf16> to vector<8x512xbf16>
    %146 = arith.extf %145 : vector<8x512xbf16> to vector<8x512xf32>
    %147 = arith.truncf %135 : vector<8x128xf32> to vector<8x128xbf16>
    %cst_34 = arith.constant dense<0.000000e+00> : vector<8x512xf32>
    %148 = tpu.matmul %147, %4, %cst_34 {dimension_numbers = #tpu.dot_dimension_numbers<[1], [0], [0], [1], [0, 0, 1, 1], [], []>} : vector<8x128xbf16>, vector<128x512xbf16>, vector<8x512xf32> -> vector<8x512xf32>
    %149 = arith.addf %146, %148 : vector<8x512xf32>
    %150 = vector.extract_strided_slice %149 {offsets = [0, 0], sizes = [8, 128], strides = [1, 1]} : vector<8x512xf32> to vector<8x128xf32>
    %151 = vector.extract_strided_slice %149 {offsets = [0, 128], sizes = [8, 128], strides = [1, 1]} : vector<8x512xf32> to vector<8x128xf32>
    %152 = vector.extract_strided_slice %149 {offsets = [0, 256], sizes = [8, 128], strides = [1, 1]} : vector<8x512xf32> to vector<8x128xf32>
    %153 = vector.extract_strided_slice %149 {offsets = [0, 384], sizes = [8, 128], strides = [1, 1]} : vector<8x512xf32> to vector<8x128xf32>
    %154 = arith.negf %150 : vector<8x128xf32>
    %155 = math.exp %154 : vector<8x128xf32>
    %cst_35 = arith.constant 1.000000e+00 : f32
    %156 = vector.broadcast %cst_35 : f32 to vector<8x128xf32>
    %157 = arith.addf %156, %155 : vector<8x128xf32>
    %158 = arith.divf %156, %157 : vector<8x128xf32>
    %159 = arith.mulf %158, %138 : vector<8x128xf32>
    %160 = arith.negf %151 : vector<8x128xf32>
    %161 = math.exp %160 : vector<8x128xf32>
    %cst_36 = arith.constant 1.000000e+00 : f32
    %162 = vector.broadcast %cst_36 : f32 to vector<8x128xf32>
    %163 = arith.addf %162, %161 : vector<8x128xf32>
    %164 = arith.divf %162, %163 : vector<8x128xf32>
    %165 = math.tanh %153 : vector<8x128xf32>
    %166 = arith.mulf %164, %165 : vector<8x128xf32>
    %167 = arith.addf %159, %166 : vector<8x128xf32>
    %168 = arith.negf %152 : vector<8x128xf32>
    %169 = math.exp %168 : vector<8x128xf32>
    %cst_37 = arith.constant 1.000000e+00 : f32
    %170 = vector.broadcast %cst_37 : f32 to vector<8x128xf32>
    %171 = arith.addf %170, %169 : vector<8x128xf32>
    %172 = arith.divf %170, %171 : vector<8x128xf32>
    %173 = math.tanh %167 : vector<8x128xf32>
    %174 = arith.mulf %172, %173 : vector<8x128xf32>
    %175 = arith.addi %5, %c3_i32 : i32
    %176 = vector.broadcast %175 : i32 to vector<8x1xi32>
    %177 = arith.cmpi slt, %176, %3 : vector<8x1xi32>
    %178 = vector.shape_cast %177 : vector<8x1xi1> to vector<8x1xi1>
    %179 = vector.broadcast %178 : vector<8x1xi1> to vector<8x128xi1>
    %180 = arith.select %179, %174, %135 : vector<8x128xi1>, vector<8x128xf32>
    %181 = vector.shape_cast %177 : vector<8x1xi1> to vector<8x1xi1>
    %182 = vector.broadcast %181 : vector<8x1xi1> to vector<8x128xi1>
    %183 = arith.select %182, %167, %138 : vector<8x128xi1>, vector<8x128xf32>
    %184 = arith.index_cast %c3_i32 : i32 to index
    %c0_38 = arith.constant 0 : index
    %c0_39 = arith.constant 0 : index
    %185 = vector.load %arg5[%184, %c0_38, %c0_39] : memref<8x8x128xf32, #tpu.memory_space<vmem>>, vector<1x8x128xf32>
    %186 = vector.shape_cast %185 : vector<1x8x128xf32> to vector<8x128xf32>
    %187 = vector.shape_cast %180 : vector<8x128xf32> to vector<1x8x128xf32>
    tpu.vector_store %arg5[%184, %c0_38, %c0_39], %187 {strides = array<i32>} : memref<8x8x128xf32, #tpu.memory_space<vmem>>, vector<1x8x128xf32>,
    %c4_i32 = arith.constant 4 : i32
    %188 = arith.index_cast %c4_i32 : i32 to index
    %c0_40 = arith.constant 0 : index
    %c0_41 = arith.constant 0 : index
    %189 = vector.load %arg3[%188, %c0_40, %c0_41] : memref<8x8x512xbf16, #tpu.memory_space<vmem>>, vector<1x8x512xbf16>
    %190 = vector.shape_cast %189 : vector<1x8x512xbf16> to vector<8x512xbf16>
    %191 = arith.extf %190 : vector<8x512xbf16> to vector<8x512xf32>
    %192 = arith.truncf %180 : vector<8x128xf32> to vector<8x128xbf16>
    %cst_42 = arith.constant dense<0.000000e+00> : vector<8x512xf32>
    %193 = tpu.matmul %192, %4, %cst_42 {dimension_numbers = #tpu.dot_dimension_numbers<[1], [0], [0], [1], [0, 0, 1, 1], [], []>} : vector<8x128xbf16>, vector<128x512xbf16>, vector<8x512xf32> -> vector<8x512xf32>
    %194 = arith.addf %191, %193 : vector<8x512xf32>
    %195 = vector.extract_strided_slice %194 {offsets = [0, 0], sizes = [8, 128], strides = [1, 1]} : vector<8x512xf32> to vector<8x128xf32>
    %196 = vector.extract_strided_slice %194 {offsets = [0, 128], sizes = [8, 128], strides = [1, 1]} : vector<8x512xf32> to vector<8x128xf32>
    %197 = vector.extract_strided_slice %194 {offsets = [0, 256], sizes = [8, 128], strides = [1, 1]} : vector<8x512xf32> to vector<8x128xf32>
    %198 = vector.extract_strided_slice %194 {offsets = [0, 384], sizes = [8, 128], strides = [1, 1]} : vector<8x512xf32> to vector<8x128xf32>
    %199 = arith.negf %195 : vector<8x128xf32>
    %200 = math.exp %199 : vector<8x128xf32>
    %cst_43 = arith.constant 1.000000e+00 : f32
    %201 = vector.broadcast %cst_43 : f32 to vector<8x128xf32>
    %202 = arith.addf %201, %200 : vector<8x128xf32>
    %203 = arith.divf %201, %202 : vector<8x128xf32>
    %204 = arith.mulf %203, %183 : vector<8x128xf32>
    %205 = arith.negf %196 : vector<8x128xf32>
    %206 = math.exp %205 : vector<8x128xf32>
    %cst_44 = arith.constant 1.000000e+00 : f32
    %207 = vector.broadcast %cst_44 : f32 to vector<8x128xf32>
    %208 = arith.addf %207, %206 : vector<8x128xf32>
    %209 = arith.divf %207, %208 : vector<8x128xf32>
    %210 = math.tanh %198 : vector<8x128xf32>
    %211 = arith.mulf %209, %210 : vector<8x128xf32>
    %212 = arith.addf %204, %211 : vector<8x128xf32>
    %213 = arith.negf %197 : vector<8x128xf32>
    %214 = math.exp %213 : vector<8x128xf32>
    %cst_45 = arith.constant 1.000000e+00 : f32
    %215 = vector.broadcast %cst_45 : f32 to vector<8x128xf32>
    %216 = arith.addf %215, %214 : vector<8x128xf32>
    %217 = arith.divf %215, %216 : vector<8x128xf32>
    %218 = math.tanh %212 : vector<8x128xf32>
    %219 = arith.mulf %217, %218 : vector<8x128xf32>
    %220 = arith.addi %5, %c4_i32 : i32
    %221 = vector.broadcast %220 : i32 to vector<8x1xi32>
    %222 = arith.cmpi slt, %221, %3 : vector<8x1xi32>
    %223 = vector.shape_cast %222 : vector<8x1xi1> to vector<8x1xi1>
    %224 = vector.broadcast %223 : vector<8x1xi1> to vector<8x128xi1>
    %225 = arith.select %224, %219, %180 : vector<8x128xi1>, vector<8x128xf32>
    %226 = vector.shape_cast %222 : vector<8x1xi1> to vector<8x1xi1>
    %227 = vector.broadcast %226 : vector<8x1xi1> to vector<8x128xi1>
    %228 = arith.select %227, %212, %183 : vector<8x128xi1>, vector<8x128xf32>
    %229 = arith.index_cast %c4_i32 : i32 to index
    %c0_46 = arith.constant 0 : index
    %c0_47 = arith.constant 0 : index
    %230 = vector.load %arg5[%229, %c0_46, %c0_47] : memref<8x8x128xf32, #tpu.memory_space<vmem>>, vector<1x8x128xf32>
    %231 = vector.shape_cast %230 : vector<1x8x128xf32> to vector<8x128xf32>
    %232 = vector.shape_cast %225 : vector<8x128xf32> to vector<1x8x128xf32>
    tpu.vector_store %arg5[%229, %c0_46, %c0_47], %232 {strides = array<i32>} : memref<8x8x128xf32, #tpu.memory_space<vmem>>, vector<1x8x128xf32>,
    %c5_i32 = arith.constant 5 : i32
    %233 = arith.index_cast %c5_i32 : i32 to index
    %c0_48 = arith.constant 0 : index
    %c0_49 = arith.constant 0 : index
    %234 = vector.load %arg3[%233, %c0_48, %c0_49] : memref<8x8x512xbf16, #tpu.memory_space<vmem>>, vector<1x8x512xbf16>
    %235 = vector.shape_cast %234 : vector<1x8x512xbf16> to vector<8x512xbf16>
    %236 = arith.extf %235 : vector<8x512xbf16> to vector<8x512xf32>
    %237 = arith.truncf %225 : vector<8x128xf32> to vector<8x128xbf16>
    %cst_50 = arith.constant dense<0.000000e+00> : vector<8x512xf32>
    %238 = tpu.matmul %237, %4, %cst_50 {dimension_numbers = #tpu.dot_dimension_numbers<[1], [0], [0], [1], [0, 0, 1, 1], [], []>} : vector<8x128xbf16>, vector<128x512xbf16>, vector<8x512xf32> -> vector<8x512xf32>
    %239 = arith.addf %236, %238 : vector<8x512xf32>
    %240 = vector.extract_strided_slice %239 {offsets = [0, 0], sizes = [8, 128], strides = [1, 1]} : vector<8x512xf32> to vector<8x128xf32>
    %241 = vector.extract_strided_slice %239 {offsets = [0, 128], sizes = [8, 128], strides = [1, 1]} : vector<8x512xf32> to vector<8x128xf32>
    %242 = vector.extract_strided_slice %239 {offsets = [0, 256], sizes = [8, 128], strides = [1, 1]} : vector<8x512xf32> to vector<8x128xf32>
    %243 = vector.extract_strided_slice %239 {offsets = [0, 384], sizes = [8, 128], strides = [1, 1]} : vector<8x512xf32> to vector<8x128xf32>
    %244 = arith.negf %240 : vector<8x128xf32>
    %245 = math.exp %244 : vector<8x128xf32>
    %cst_51 = arith.constant 1.000000e+00 : f32
    %246 = vector.broadcast %cst_51 : f32 to vector<8x128xf32>
    %247 = arith.addf %246, %245 : vector<8x128xf32>
    %248 = arith.divf %246, %247 : vector<8x128xf32>
    %249 = arith.mulf %248, %228 : vector<8x128xf32>
    %250 = arith.negf %241 : vector<8x128xf32>
    %251 = math.exp %250 : vector<8x128xf32>
    %cst_52 = arith.constant 1.000000e+00 : f32
    %252 = vector.broadcast %cst_52 : f32 to vector<8x128xf32>
    %253 = arith.addf %252, %251 : vector<8x128xf32>
    %254 = arith.divf %252, %253 : vector<8x128xf32>
    %255 = math.tanh %243 : vector<8x128xf32>
    %256 = arith.mulf %254, %255 : vector<8x128xf32>
    %257 = arith.addf %249, %256 : vector<8x128xf32>
    %258 = arith.negf %242 : vector<8x128xf32>
    %259 = math.exp %258 : vector<8x128xf32>
    %cst_53 = arith.constant 1.000000e+00 : f32
    %260 = vector.broadcast %cst_53 : f32 to vector<8x128xf32>
    %261 = arith.addf %260, %259 : vector<8x128xf32>
    %262 = arith.divf %260, %261 : vector<8x128xf32>
    %263 = math.tanh %257 : vector<8x128xf32>
    %264 = arith.mulf %262, %263 : vector<8x128xf32>
    %265 = arith.addi %5, %c5_i32 : i32
    %266 = vector.broadcast %265 : i32 to vector<8x1xi32>
    %267 = arith.cmpi slt, %266, %3 : vector<8x1xi32>
    %268 = vector.shape_cast %267 : vector<8x1xi1> to vector<8x1xi1>
    %269 = vector.broadcast %268 : vector<8x1xi1> to vector<8x128xi1>
    %270 = arith.select %269, %264, %225 : vector<8x128xi1>, vector<8x128xf32>
    %271 = vector.shape_cast %267 : vector<8x1xi1> to vector<8x1xi1>
    %272 = vector.broadcast %271 : vector<8x1xi1> to vector<8x128xi1>
    %273 = arith.select %272, %257, %228 : vector<8x128xi1>, vector<8x128xf32>
    %274 = arith.index_cast %c5_i32 : i32 to index
    %c0_54 = arith.constant 0 : index
    %c0_55 = arith.constant 0 : index
    %275 = vector.load %arg5[%274, %c0_54, %c0_55] : memref<8x8x128xf32, #tpu.memory_space<vmem>>, vector<1x8x128xf32>
    %276 = vector.shape_cast %275 : vector<1x8x128xf32> to vector<8x128xf32>
    %277 = vector.shape_cast %270 : vector<8x128xf32> to vector<1x8x128xf32>
    tpu.vector_store %arg5[%274, %c0_54, %c0_55], %277 {strides = array<i32>} : memref<8x8x128xf32, #tpu.memory_space<vmem>>, vector<1x8x128xf32>,
    %c6_i32 = arith.constant 6 : i32
    %278 = arith.index_cast %c6_i32 : i32 to index
    %c0_56 = arith.constant 0 : index
    %c0_57 = arith.constant 0 : index
    %279 = vector.load %arg3[%278, %c0_56, %c0_57] : memref<8x8x512xbf16, #tpu.memory_space<vmem>>, vector<1x8x512xbf16>
    %280 = vector.shape_cast %279 : vector<1x8x512xbf16> to vector<8x512xbf16>
    %281 = arith.extf %280 : vector<8x512xbf16> to vector<8x512xf32>
    %282 = arith.truncf %270 : vector<8x128xf32> to vector<8x128xbf16>
    %cst_58 = arith.constant dense<0.000000e+00> : vector<8x512xf32>
    %283 = tpu.matmul %282, %4, %cst_58 {dimension_numbers = #tpu.dot_dimension_numbers<[1], [0], [0], [1], [0, 0, 1, 1], [], []>} : vector<8x128xbf16>, vector<128x512xbf16>, vector<8x512xf32> -> vector<8x512xf32>
    %284 = arith.addf %281, %283 : vector<8x512xf32>
    %285 = vector.extract_strided_slice %284 {offsets = [0, 0], sizes = [8, 128], strides = [1, 1]} : vector<8x512xf32> to vector<8x128xf32>
    %286 = vector.extract_strided_slice %284 {offsets = [0, 128], sizes = [8, 128], strides = [1, 1]} : vector<8x512xf32> to vector<8x128xf32>
    %287 = vector.extract_strided_slice %284 {offsets = [0, 256], sizes = [8, 128], strides = [1, 1]} : vector<8x512xf32> to vector<8x128xf32>
    %288 = vector.extract_strided_slice %284 {offsets = [0, 384], sizes = [8, 128], strides = [1, 1]} : vector<8x512xf32> to vector<8x128xf32>
    %289 = arith.negf %285 : vector<8x128xf32>
    %290 = math.exp %289 : vector<8x128xf32>
    %cst_59 = arith.constant 1.000000e+00 : f32
    %291 = vector.broadcast %cst_59 : f32 to vector<8x128xf32>
    %292 = arith.addf %291, %290 : vector<8x128xf32>
    %293 = arith.divf %291, %292 : vector<8x128xf32>
    %294 = arith.mulf %293, %273 : vector<8x128xf32>
    %295 = arith.negf %286 : vector<8x128xf32>
    %296 = math.exp %295 : vector<8x128xf32>
    %cst_60 = arith.constant 1.000000e+00 : f32
    %297 = vector.broadcast %cst_60 : f32 to vector<8x128xf32>
    %298 = arith.addf %297, %296 : vector<8x128xf32>
    %299 = arith.divf %297, %298 : vector<8x128xf32>
    %300 = math.tanh %288 : vector<8x128xf32>
    %301 = arith.mulf %299, %300 : vector<8x128xf32>
    %302 = arith.addf %294, %301 : vector<8x128xf32>
    %303 = arith.negf %287 : vector<8x128xf32>
    %304 = math.exp %303 : vector<8x128xf32>
    %cst_61 = arith.constant 1.000000e+00 : f32
    %305 = vector.broadcast %cst_61 : f32 to vector<8x128xf32>
    %306 = arith.addf %305, %304 : vector<8x128xf32>
    %307 = arith.divf %305, %306 : vector<8x128xf32>
    %308 = math.tanh %302 : vector<8x128xf32>
    %309 = arith.mulf %307, %308 : vector<8x128xf32>
    %310 = arith.addi %5, %c6_i32 : i32
    %311 = vector.broadcast %310 : i32 to vector<8x1xi32>
    %312 = arith.cmpi slt, %311, %3 : vector<8x1xi32>
    %313 = vector.shape_cast %312 : vector<8x1xi1> to vector<8x1xi1>
    %314 = vector.broadcast %313 : vector<8x1xi1> to vector<8x128xi1>
    %315 = arith.select %314, %309, %270 : vector<8x128xi1>, vector<8x128xf32>
    %316 = vector.shape_cast %312 : vector<8x1xi1> to vector<8x1xi1>
    %317 = vector.broadcast %316 : vector<8x1xi1> to vector<8x128xi1>
    %318 = arith.select %317, %302, %273 : vector<8x128xi1>, vector<8x128xf32>
    %319 = arith.index_cast %c6_i32 : i32 to index
    %c0_62 = arith.constant 0 : index
    %c0_63 = arith.constant 0 : index
    %320 = vector.load %arg5[%319, %c0_62, %c0_63] : memref<8x8x128xf32, #tpu.memory_space<vmem>>, vector<1x8x128xf32>
    %321 = vector.shape_cast %320 : vector<1x8x128xf32> to vector<8x128xf32>
    %322 = vector.shape_cast %315 : vector<8x128xf32> to vector<1x8x128xf32>
    tpu.vector_store %arg5[%319, %c0_62, %c0_63], %322 {strides = array<i32>} : memref<8x8x128xf32, #tpu.memory_space<vmem>>, vector<1x8x128xf32>,
    %c7_i32 = arith.constant 7 : i32
    %323 = arith.index_cast %c7_i32 : i32 to index
    %c0_64 = arith.constant 0 : index
    %c0_65 = arith.constant 0 : index
    %324 = vector.load %arg3[%323, %c0_64, %c0_65] : memref<8x8x512xbf16, #tpu.memory_space<vmem>>, vector<1x8x512xbf16>
    %325 = vector.shape_cast %324 : vector<1x8x512xbf16> to vector<8x512xbf16>
    %326 = arith.extf %325 : vector<8x512xbf16> to vector<8x512xf32>
    %327 = arith.truncf %315 : vector<8x128xf32> to vector<8x128xbf16>
    %cst_66 = arith.constant dense<0.000000e+00> : vector<8x512xf32>
    %328 = tpu.matmul %327, %4, %cst_66 {dimension_numbers = #tpu.dot_dimension_numbers<[1], [0], [0], [1], [0, 0, 1, 1], [], []>} : vector<8x128xbf16>, vector<128x512xbf16>, vector<8x512xf32> -> vector<8x512xf32>
    %329 = arith.addf %326, %328 : vector<8x512xf32>
    %330 = vector.extract_strided_slice %329 {offsets = [0, 0], sizes = [8, 128], strides = [1, 1]} : vector<8x512xf32> to vector<8x128xf32>
    %331 = vector.extract_strided_slice %329 {offsets = [0, 128], sizes = [8, 128], strides = [1, 1]} : vector<8x512xf32> to vector<8x128xf32>
    %332 = vector.extract_strided_slice %329 {offsets = [0, 256], sizes = [8, 128], strides = [1, 1]} : vector<8x512xf32> to vector<8x128xf32>
    %333 = vector.extract_strided_slice %329 {offsets = [0, 384], sizes = [8, 128], strides = [1, 1]} : vector<8x512xf32> to vector<8x128xf32>
    %334 = arith.negf %330 : vector<8x128xf32>
    %335 = math.exp %334 : vector<8x128xf32>
    %cst_67 = arith.constant 1.000000e+00 : f32
    %336 = vector.broadcast %cst_67 : f32 to vector<8x128xf32>
    %337 = arith.addf %336, %335 : vector<8x128xf32>
    %338 = arith.divf %336, %337 : vector<8x128xf32>
    %339 = arith.mulf %338, %318 : vector<8x128xf32>
    %340 = arith.negf %331 : vector<8x128xf32>
    %341 = math.exp %340 : vector<8x128xf32>
    %cst_68 = arith.constant 1.000000e+00 : f32
    %342 = vector.broadcast %cst_68 : f32 to vector<8x128xf32>
    %343 = arith.addf %342, %341 : vector<8x128xf32>
    %344 = arith.divf %342, %343 : vector<8x128xf32>
    %345 = math.tanh %333 : vector<8x128xf32>
    %346 = arith.mulf %344, %345 : vector<8x128xf32>
    %347 = arith.addf %339, %346 : vector<8x128xf32>
    %348 = arith.negf %332 : vector<8x128xf32>
    %349 = math.exp %348 : vector<8x128xf32>
    %cst_69 = arith.constant 1.000000e+00 : f32
    %350 = vector.broadcast %cst_69 : f32 to vector<8x128xf32>
    %351 = arith.addf %350, %349 : vector<8x128xf32>
    %352 = arith.divf %350, %351 : vector<8x128xf32>
    %353 = math.tanh %347 : vector<8x128xf32>
    %354 = arith.mulf %352, %353 : vector<8x128xf32>
    %355 = arith.addi %5, %c7_i32 : i32
    %356 = vector.broadcast %355 : i32 to vector<8x1xi32>
    %357 = arith.cmpi slt, %356, %3 : vector<8x1xi32>
    %358 = vector.shape_cast %357 : vector<8x1xi1> to vector<8x1xi1>
    %359 = vector.broadcast %358 : vector<8x1xi1> to vector<8x128xi1>
    %360 = arith.select %359, %354, %315 : vector<8x128xi1>, vector<8x128xf32>
    %361 = vector.shape_cast %357 : vector<8x1xi1> to vector<8x1xi1>
    %362 = vector.broadcast %361 : vector<8x1xi1> to vector<8x128xi1>
    %363 = arith.select %362, %347, %318 : vector<8x128xi1>, vector<8x128xf32>
    %364 = arith.index_cast %c7_i32 : i32 to index
    %c0_70 = arith.constant 0 : index
    %c0_71 = arith.constant 0 : index
    %365 = vector.load %arg5[%364, %c0_70, %c0_71] : memref<8x8x128xf32, #tpu.memory_space<vmem>>, vector<1x8x128xf32>
    %366 = vector.shape_cast %365 : vector<1x8x128xf32> to vector<8x128xf32>
    %367 = vector.shape_cast %360 : vector<8x128xf32> to vector<1x8x128xf32>
    tpu.vector_store %arg5[%364, %c0_70, %c0_71], %367 {strides = array<i32>} : memref<8x8x128xf32, #tpu.memory_space<vmem>>, vector<1x8x128xf32>,
    %c8_i32_72 = arith.constant 8 : i32
    %c0_73 = arith.constant 0 : index
    %c0_74 = arith.constant 0 : index
    %368 = vector.load %arg8[%c0_73, %c0_74] : memref<8x128xf32, #tpu.memory_space<vmem>>, vector<8x128xf32>
    tpu.vector_store %arg8[%c0_73, %c0_74], %360 {strides = array<i32>} : memref<8x128xf32, #tpu.memory_space<vmem>>, vector<8x128xf32>,
    %c0_75 = arith.constant 0 : index
    %c0_76 = arith.constant 0 : index
    %369 = vector.load %arg9[%c0_75, %c0_76] : memref<8x128xf32, #tpu.memory_space<vmem>>, vector<8x128xf32>
    tpu.vector_store %arg9[%c0_75, %c0_76], %363 {strides = array<i32>} : memref<8x128xf32, #tpu.memory_space<vmem>>, vector<8x128xf32>,
    %c0_i32_77 = arith.constant 0 : i32
    %370 = arith.cmpi eq, %arg1, %c0_i32_77 : i32
    %371 = arith.extui %370 : i1 to i32
    %c0_i32_78 = arith.constant 0 : i32
    %372 = arith.cmpi ne, %371, %c0_i32_78 : i32
    scf.if %372 {
      %c0_79 = arith.constant 0 : index
      %c0_80 = arith.constant 0 : index
      %373 = vector.load %arg6[%c0_79, %c0_80] : memref<8x128xf32, #tpu.memory_space<vmem>>, vector<8x128xf32>
      tpu.vector_store %arg6[%c0_79, %c0_80], %360 {strides = array<i32>} : memref<8x128xf32, #tpu.memory_space<vmem>>, vector<8x128xf32>,
      %c0_81 = arith.constant 0 : index
      %c0_82 = arith.constant 0 : index
      %374 = vector.load %arg7[%c0_81, %c0_82] : memref<8x128xf32, #tpu.memory_space<vmem>>, vector<8x128xf32>
      tpu.vector_store %arg7[%c0_81, %c0_82], %363 {strides = array<i32>} : memref<8x128xf32, #tpu.memory_space<vmem>>, vector<8x128xf32>,
    } else {
    }
    return
  }
  func.func @transform_0(%arg0: i32, %arg1: i32) -> (i32, i32) {
    %c0_i32 = arith.constant 0 : i32
    %c0_i32_0 = arith.constant 0 : i32
    return %arg0, %c0_i32 : i32, i32
  }
  func.func @transform_1(%arg0: i32, %arg1: i32) -> (i32, i32, i32) {
    %c0_i32 = arith.constant 0 : i32
    %c0_i32_0 = arith.constant 0 : i32
    return %arg1, %arg0, %c0_i32 : i32, i32, i32
  }
  func.func @transform_2(%arg0: i32, %arg1: i32) -> (i32, i32) {
    %c0_i32 = arith.constant 0 : i32
    %c0_i32_0 = arith.constant 0 : i32
    %c0_i32_1 = arith.constant 0 : i32
    return %c0_i32, %c0_i32_0 : i32, i32
  }
  func.func @transform_3(%arg0: i32, %arg1: i32) -> (i32, i32, i32) {
    %c0_i32 = arith.constant 0 : i32
    %c0_i32_0 = arith.constant 0 : i32
    return %arg1, %arg0, %c0_i32 : i32, i32, i32
  }
  func.func @transform_4(%arg0: i32, %arg1: i32) -> (i32, i32) {
    %c0_i32 = arith.constant 0 : i32
    %c0_i32_0 = arith.constant 0 : i32
    return %arg0, %c0_i32 : i32, i32
  }
  func.func @transform_5(%arg0: i32, %arg1: i32) -> (i32, i32) {
    %c0_i32 = arith.constant 0 : i32
    %c0_i32_0 = arith.constant 0 : i32
    return %arg0, %c0_i32 : i32, i32
  }
}

</mosaic_0001>

<llo_original>
// kernel: rnn_forward.2
$region0: #{rnn_forward.2}
  #allocation0 [shape = 'u32[]', space=smem, size = 0x4, offset = 0x4, fixed_abs, tag = 'smem constant byte address 0x4 - core index']
  #allocation1 [shape = 'u32[144,128]{1,0:T(1,128)}', space=vmem, size = 0x12000, scoped, tag = 'internal scratch']
  #allocation2 [shape = 'f32[8,128]{1,0:T(8,128)}', space=vmem, size = 0x1000, scoped, tag = 'scratch operand']
  #allocation3 [shape = 'f32[8,128]{1,0:T(8,128)}', space=vmem, size = 0x1000, scoped, tag = 'scratch operand']
  %s0 = inlined_call_operand.vmem [shape: s32[8,1], index: 0, kind: input, shape index: {}]
  %s1 = inlined_call_operand.vmem [shape: bf16[8,8,512], index: 1, kind: input, shape index: {}]
  %s2 = inlined_call_operand.vmem [shape: bf16[128,512], index: 2, kind: input, shape index: {}]
  %s3 = inlined_call_operand.vmem [shape: f32[8,8,128], index: 3, kind: output, shape index: {0}]
  %s4 = inlined_call_operand.vmem [shape: f32[8,128], index: 4, kind: output, shape index: {1}]
  %s5 = inlined_call_operand.hbm [shape: f32[8,128], index: 5, kind: output, shape index: {2}]
  %6 = xla_tuple %s3, %s4, %s5
  %s7 = sld [smem:[#allocation0]]
  $region46: #{rnn_forward.2} parent=0
    _
  %s9 = ssub.s32 1, %s7
  %s10 = scalar_select 0, %s9, %s7
  $region1: #{rnn_forward.2} parent=0
    #allocation4 [shape = 'u8[4096]{0}', space=vmem, size = 0x1000, scoped, tag = 'output window, operand 2, single buffered']
    #allocation5 [shape = 's32[1]{0}', space=sflag, size = 0x4, scoped, tag = 'scoped memory for rnn_forward.2']
    %11 = vsyncpa [#allocation5], 0
    // Predicated region
    $region2: #{rnn_forward.2} parent=1 // pred_check
      _
    $region3: #{rnn_forward.2} parent=1 // pred_check_branch
      %13 = sbr.rel (0) target = $region5
    $region4: #{rnn_forward.2} parent=1 // pred_region
      _
    $region5: #{rnn_forward.2} parent=1 // pred_fallthru
      _
    // Predicated region
    $region6: #{rnn_forward.2} parent=1 // pred_check
      _
    $region7: #{rnn_forward.2} parent=1 // pred_check_branch
      %15 = sbr.rel (0) target = $region9
    $region8: #{rnn_forward.2} parent=1 // pred_region
      _
    $region9: #{rnn_forward.2} parent=1 // pred_fallthru
      _
    // Predicated region
    $region10: #{rnn_forward.2} parent=1 // pred_check
      _
    $region11: #{rnn_forward.2} parent=1 // pred_check_branch
      %17 = sbr.rel (0) target = $region13
    $region12: #{rnn_forward.2} parent=1 // pred_region
      _
    $region13: #{rnn_forward.2} parent=1 // pred_fallthru
      _
    %p19 = scmp.eq.s32.totalorder 0, 0
    // Predicated region
    $region14: #{rnn_forward.2} parent=1 // pred_check
      %p20 = pneg %p19
    $region15: #{rnn_forward.2} parent=1 // pred_check_branch
      %22 = sbr.rel (%p20) target = $region17
    $region16: #{rnn_forward.2} parent=1 // pred_region
      %23 = vst [vmem:[#allocation2] sm:$0xff] 0.0
      %24 = vst [vmem:[#allocation3] sm:$0xff] 0.0
    $region17: #{rnn_forward.2} parent=1 // pred_fallthru
      _
    %v25 = vld [vmem:[%s0] sm:$0xff]
    %v26 = vld [vmem:[%s2] sm:$0xff]
    %v27 = vld [vmem:[%s2 + $0x8] sm:$0xff]
    %v28 = vld [vmem:[%s2 + $0x10] sm:$0xff]
    %v29 = vld [vmem:[%s2 + $0x18] sm:$0xff]
    %v30 = vld [vmem:[%s2 + $0x20] sm:$0xff]
    %v31 = vld [vmem:[%s2 + $0x28] sm:$0xff]
    %v32 = vld [vmem:[%s2 + $0x30] sm:$0xff]
    %v33 = vld [vmem:[%s2 + $0x38] sm:$0xff]
    %v34 = vld [vmem:[%s2 + $0x40] sm:$0xff]
    %v35 = vld [vmem:[%s2 + $0x48] sm:$0xff]
    %v36 = vld [vmem:[%s2 + $0x50] sm:$0xff]
    %v37 = vld [vmem:[%s2 + $0x58] sm:$0xff]
    %v38 = vld [vmem:[%s2 + $0x60] sm:$0xff]
    %v39 = vld [vmem:[%s2 + $0x68] sm:$0xff]
    %v40 = vld [vmem:[%s2 + $0x70] sm:$0xff]
    %v41 = vld [vmem:[%s2 + $0x78] sm:$0xff]
    %v42 = vld [vmem:[%s2 + $0x80] sm:$0xff]
    %v43 = vld [vmem:[%s2 + $0x88] sm:$0xff]
    %v44 = vld [vmem:[%s2 + $0x90] sm:$0xff]
    %v45 = vld [vmem:[%s2 + $0x98] sm:$0xff]
    %v46 = vld [vmem:[%s2 + $0xa0] sm:$0xff]
    %v47 = vld [vmem:[%s2 + $0xa8] sm:$0xff]
    %v48 = vld [vmem:[%s2 + $0xb0] sm:$0xff]
    %v49 = vld [vmem:[%s2 + $0xb8] sm:$0xff]
    %v50 = vld [vmem:[%s2 + $0xc0] sm:$0xff]
    %v51 = vld [vmem:[%s2 + $0xc8] sm:$0xff]
    %v52 = vld [vmem:[%s2 + $0xd0] sm:$0xff]
    %v53 = vld [vmem:[%s2 + $0xd8] sm:$0xff]
    %v54 = vld [vmem:[%s2 + $0xe0] sm:$0xff]
    %v55 = vld [vmem:[%s2 + $0xe8] sm:$0xff]
    %v56 = vld [vmem:[%s2 + $0xf0] sm:$0xff]
    %v57 = vld [vmem:[%s2 + $0xf8] sm:$0xff]
    %s58 = smul.u32 0, 8
    %v59 = vld [vmem:[#allocation2] sm:$0xff]
    %v60 = vld [vmem:[#allocation3] sm:$0xff]
    %v61 = vld [vmem:[%s1] sm:$0xff]
    %v62 = vld [vmem:[%s1 + $0x8] sm:$0xff]
    %v63 = vunpack.c.l.bf16 %v61
    %v64 = vunpack.c.h.bf16 %v61
    %v65 = vunpack.c.l.bf16 %v62
    %v66 = vunpack.c.h.bf16 %v62
    %v67 = vpack.c.bf16 %v59, %v59
    %v100 = vunpack.c.l.b16 %v26
    %v101 = vunpack.c.h.b16 %v26
    %v102 = vunpack.c.l.b16 %v27
    %v103 = vunpack.c.h.b16 %v27
    %v104 = vunpack.c.l.b16 %v28
    %v105 = vunpack.c.h.b16 %v28
    %v106 = vunpack.c.l.b16 %v29
    %v107 = vunpack.c.h.b16 %v29
    %v108 = vunpack.c.l.b16 %v30
    %v109 = vunpack.c.h.b16 %v30
    %v110 = vunpack.c.l.b16 %v31
    %v111 = vunpack.c.h.b16 %v31
    %v112 = vunpack.c.l.b16 %v32
    %v113 = vunpack.c.h.b16 %v32
    %v114 = vunpack.c.l.b16 %v33
    %v115 = vunpack.c.h.b16 %v33
    %v116 = vunpack.c.l.b16 %v34
    %v117 = vunpack.c.h.b16 %v34
    %v118 = vunpack.c.l.b16 %v35
    %v119 = vunpack.c.h.b16 %v35
    %v120 = vunpack.c.l.b16 %v36
    %v121 = vunpack.c.h.b16 %v36
    %v122 = vunpack.c.l.b16 %v37
    %v123 = vunpack.c.h.b16 %v37
    %v124 = vunpack.c.l.b16 %v38
    %v125 = vunpack.c.h.b16 %v38
    %v126 = vunpack.c.l.b16 %v39
    %v127 = vunpack.c.h.b16 %v39
    %v128 = vunpack.c.l.b16 %v40
    %v129 = vunpack.c.h.b16 %v40
    %v130 = vunpack.c.l.b16 %v41
    %v131 = vunpack.c.h.b16 %v41
    %v132 = vunpack.c.l.b16 %v42
    %v133 = vunpack.c.h.b16 %v42
    %v134 = vunpack.c.l.b16 %v43
    %v135 = vunpack.c.h.b16 %v43
    %v136 = vunpack.c.l.b16 %v44
    %v137 = vunpack.c.h.b16 %v44
    %v138 = vunpack.c.l.b16 %v45
    %v139 = vunpack.c.h.b16 %v45
    %v140 = vunpack.c.l.b16 %v46
    %v141 = vunpack.c.h.b16 %v46
    %v142 = vunpack.c.l.b16 %v47
    %v143 = vunpack.c.h.b16 %v47
    %v144 = vunpack.c.l.b16 %v48
    %v145 = vunpack.c.h.b16 %v48
    %v146 = vunpack.c.l.b16 %v49
    %v147 = vunpack.c.h.b16 %v49
    %v148 = vunpack.c.l.b16 %v50
    %v149 = vunpack.c.h.b16 %v50
    %v150 = vunpack.c.l.b16 %v51
    %v151 = vunpack.c.h.b16 %v51
    %v152 = vunpack.c.l.b16 %v52
    %v153 = vunpack.c.h.b16 %v52
    %v154 = vunpack.c.l.b16 %v53
    %v155 = vunpack.c.h.b16 %v53
    %v156 = vunpack.c.l.b16 %v54
    %v157 = vunpack.c.h.b16 %v54
    %v158 = vunpack.c.l.b16 %v55
    %v159 = vunpack.c.h.b16 %v55
    %v160 = vunpack.c.l.b16 %v56
    %v161 = vunpack.c.h.b16 %v56
    %v162 = vunpack.c.l.b16 %v57
    %v163 = vunpack.c.h.b16 %v57
    %v164 = vpack.c.b16 %v104, %v100
    %v165 = vpack.c.b16 %v105, %v101
    %v166 = vpack.c.b16 %v106, %v102
    %v167 = vpack.c.b16 %v107, %v103
    %v168 = vpack.c.b16 %v112, %v108
    %v169 = vpack.c.b16 %v113, %v109
    %v170 = vpack.c.b16 %v114, %v110
    %v171 = vpack.c.b16 %v115, %v111
    %v172 = vpack.c.b16 %v120, %v116
    %v173 = vpack.c.b16 %v121, %v117
    %v174 = vpack.c.b16 %v122, %v118
    %v175 = vpack.c.b16 %v123, %v119
    %v176 = vpack.c.b16 %v128, %v124
    %v177 = vpack.c.b16 %v129, %v125
    %v178 = vpack.c.b16 %v130, %v126
    %v179 = vpack.c.b16 %v131, %v127
    %v180 = vpack.c.b16 %v136, %v132
    %v181 = vpack.c.b16 %v137, %v133
    %v182 = vpack.c.b16 %v138, %v134
    %v183 = vpack.c.b16 %v139, %v135
    %v184 = vpack.c.b16 %v144, %v140
    %v185 = vpack.c.b16 %v145, %v141
    %v186 = vpack.c.b16 %v146, %v142
    %v187 = vpack.c.b16 %v147, %v143
    %v188 = vpack.c.b16 %v152, %v148
    %v189 = vpack.c.b16 %v153, %v149
    %v190 = vpack.c.b16 %v154, %v150
    %v191 = vpack.c.b16 %v155, %v151
    %v192 = vpack.c.b16 %v160, %v156
    %v193 = vpack.c.b16 %v161, %v157
    %v194 = vpack.c.b16 %v162, %v158
    %v195 = vpack.c.b16 %v163, %v159
    %228 = vmatprep.subr.bf16.mxu0 %v165
    %229 = vmatpush1.bf16.msra.mxu0 %v164
    %230 = vmatprep.subr.bf16.mxu0 %v169
    %231 = vmatpush1.bf16.msra.mxu0 %v168
    %232 = vmatprep.subr.bf16.mxu0 %v173
    %233 = vmatpush1.bf16.msra.mxu0 %v172
    %234 = vmatprep.subr.bf16.mxu0 %v177
    %235 = vmatpush1.bf16.msra.mxu0 %v176
    %236 = vmatprep.subr.bf16.mxu0 %v181
    %237 = vmatpush1.bf16.msra.mxu0 %v180
    %238 = vmatprep.subr.bf16.mxu0 %v185
    %239 = vmatpush1.bf16.msra.mxu0 %v184
    %240 = vmatprep.subr.bf16.mxu0 %v189
    %241 = vmatpush1.bf16.msra.mxu0 %v188
    %242 = vmatprep.subr.bf16.mxu0 %v193
    %243 = vmatpush1.bf16.msra.mxu0 %v192
    %244 = vmatprep.subr.bf16.mxu0 0
    %245 = vmatpush1.bf16.msra.mxu0 0
    %246 = vmatprep.subr.bf16.mxu0 0
    %247 = vmatpush1.bf16.msra.mxu0 0
    %248 = vmatprep.subr.bf16.mxu0 0
    %249 = vmatpush1.bf16.msra.mxu0 0
    %250 = vmatprep.subr.bf16.mxu0 0
    %251 = vmatpush1.bf16.msra.mxu0 0
    %252 = vmatprep.subr.bf16.mxu0 0
    %253 = vmatpush1.bf16.msra.mxu0 0
    %254 = vmatprep.subr.bf16.mxu0 0
    %255 = vmatpush1.bf16.msra.mxu0 0
    %256 = vmatprep.subr.bf16.mxu0 0
    %257 = vmatpush1.bf16.msra.mxu0 0
    %258 = vmatprep.subr.bf16.mxu0 0
    %259 = vmatpush1.bf16.msra.mxu0 0
    %260 = vmatprep.mubr.bf16.mxu0 0
    %261 = vmatmul.mubr.bf16.gmra.mrb[0].mxu0 %v67
    %v262 = vpop.f32.mrb[0].mxu0
    %v263 = vadd.f32 0.0, %v262
    %v264 = vpop.f32.mrb[0].mxu0
    %v265 = vadd.f32 0.0, %v264
    %v266 = vpop.f32.mrb[0].mxu0
    %v267 = vpop.f32.mrb[0].mxu0
    %268 = vdwg.mxu0
    %269 = vmatprep.subr.bf16.mxu0 %v167
    %270 = vmatpush1.bf16.msra.mxu0 %v166
    %271 = vmatprep.subr.bf16.mxu0 %v171
    %272 = vmatpush1.bf16.msra.mxu0 %v170
    %273 = vmatprep.subr.bf16.mxu0 %v175
    %274 = vmatpush1.bf16.msra.mxu0 %v174
    %275 = vmatprep.subr.bf16.mxu0 %v179
    %276 = vmatpush1.bf16.msra.mxu0 %v178
    %277 = vmatprep.subr.bf16.mxu0 %v183
    %278 = vmatpush1.bf16.msra.mxu0 %v182
    %279 = vmatprep.subr.bf16.mxu0 %v187
    %280 = vmatpush1.bf16.msra.mxu0 %v186
    %281 = vmatprep.subr.bf16.mxu0 %v191
    %282 = vmatpush1.bf16.msra.mxu0 %v190
    %283 = vmatprep.subr.bf16.mxu0 %v195
    %284 = vmatpush1.bf16.msra.mxu0 %v194
    %285 = vmatprep.subr.bf16.mxu0 0
    %286 = vmatpush1.bf16.msra.mxu0 0
    %287 = vmatprep.subr.bf16.mxu0 0
    %288 = vmatpush1.bf16.msra.mxu0 0
    %289 = vmatprep.subr.bf16.mxu0 0
    %290 = vmatpush1.bf16.msra.mxu0 0
    %291 = vmatprep.subr.bf16.mxu0 0
    %292 = vmatpush1.bf16.msra.mxu0 0
    %293 = vmatprep.subr.bf16.mxu0 0
    %294 = vmatpush1.bf16.msra.mxu0 0
    %295 = vmatprep.subr.bf16.mxu0 0
    %296 = vmatpush1.bf16.msra.mxu0 0
    %297 = vmatprep.subr.bf16.mxu0 0
    %298 = vmatpush1.bf16.msra.mxu0 0
    %299 = vmatprep.subr.bf16.mxu0 0
    %300 = vmatpush1.bf16.msra.mxu0 0
    %301 = vmatprep.mubr.bf16.mxu0 0
    %302 = vmatmul.mubr.bf16.gmra.mrb[0].mxu0 %v67
    %v303 = vpop.f32.mrb[0].mxu0
    %v304 = vadd.f32 0.0, %v303
    %v305 = vpop.f32.mrb[0].mxu0
    %v306 = vadd.f32 0.0, %v305
    %v307 = vpop.f32.mrb[0].mxu0
    %v308 = vpop.f32.mrb[0].mxu0
    %309 = vdwg.mxu0
    %v310 = vadd.f32 %v63, %v263
    %v311 = vadd.f32 %v64, %v265
    %v312 = vadd.f32 %v65, %v304
    %v313 = vadd.f32 %v66, %v306
    %v314 = vxor.u32 %v310, 2147483648
    %v315 = vmul.f32 %v314, 1.442695
    %v316 = vpow.pop %v315
    %v317 = vadd.f32 %v316, 1.0
    %v318 = vrcp.pop %v317
    %v319 = vmul.f32 1.0, %v318
    %v320 = vmul.f32 %v319, %v60
    %v321 = vxor.u32 %v311, 2147483648
    %v322 = vmul.f32 %v321, 1.442695
    %v323 = vpow.pop %v322
    %v324 = vadd.f32 %v323, 1.0
    %v325 = vrcp.pop %v324
    %v326 = vmul.f32 1.0, %v325
    %v327 = vtanh.pop %v313
    %v328 = vmul.f32 %v326, %v327
    %v329 = vadd.f32 %v320, %v328
    %v330 = vxor.u32 %v312, 2147483648
    %v331 = vmul.f32 %v330, 1.442695
    %v332 = vpow.pop %v331
    %v333 = vadd.f32 %v332, 1.0
    %v334 = vrcp.pop %v333
    %v335 = vmul.f32 1.0, %v334
    %v336 = vtanh.pop %v329
    %v337 = vmul.f32 %v335, %v336
    %v338 = vstv %s58
    %vm339 = vcmp.lt.s32.totalorder %v338, %v25
    %v340 = vsel %vm339, 1, 0
    %341 = vset.pattern.permute.xlu0 0
    %342 = vperm.xlu0 %341, %v340
    %v343 = vpop.permute.xlu0 %342
    %vm344 = vcmp.eq.s32.totalorder %v343, 1
    %v345 = vsel %vm344, %v337, %v59
    %v346 = vsel %vm344, %v329, %v60
    %347 = vst [vmem:[%s3] sm:$0xff] %v345
    %s348 = scalar_lea.vmem %s1, 16
    %v349 = vld [vmem:[%s348] sm:$0xff]
    %v350 = vld [vmem:[%s348 + $0x8] sm:$0xff]
    %v351 = vunpack.c.l.bf16 %v349
    %v352 = vunpack.c.h.bf16 %v349
    %v353 = vunpack.c.l.bf16 %v350
    %v354 = vunpack.c.h.bf16 %v350
    %v355 = vpack.c.bf16 %v345, %v345
    %356 = vmatprep.subr.bf16.mxu0 %v165
    %357 = vmatpush1.bf16.msra.mxu0 %v164
    %358 = vmatprep.subr.bf16.mxu0 %v169
    %359 = vmatpush1.bf16.msra.mxu0 %v168
    %360 = vmatprep.subr.bf16.mxu0 %v173
    %361 = vmatpush1.bf16.msra.mxu0 %v172
    %362 = vmatprep.subr.bf16.mxu0 %v177
    %363 = vmatpush1.bf16.msra.mxu0 %v176
    %364 = vmatprep.subr.bf16.mxu0 %v181
    %365 = vmatpush1.bf16.msra.mxu0 %v180
    %366 = vmatprep.subr.bf16.mxu0 %v185
    %367 = vmatpush1.bf16.msra.mxu0 %v184
    %368 = vmatprep.subr.bf16.mxu0 %v189
    %369 = vmatpush1.bf16.msra.mxu0 %v188
    %370 = vmatprep.subr.bf16.mxu0 %v193
    %371 = vmatpush1.bf16.msra.mxu0 %v192
    %372 = vmatprep.subr.bf16.mxu0 0
    %373 = vmatpush1.bf16.msra.mxu0 0
    %374 = vmatprep.subr.bf16.mxu0 0
    %375 = vmatpush1.bf16.msra.mxu0 0
    %376 = vmatprep.subr.bf16.mxu0 0
    %377 = vmatpush1.bf16.msra.mxu0 0
    %378 = vmatprep.subr.bf16.mxu0 0
    %379 = vmatpush1.bf16.msra.mxu0 0
    %380 = vmatprep.subr.bf16.mxu0 0
    %381 = vmatpush1.bf16.msra.mxu0 0
    %382 = vmatprep.subr.bf16.mxu0 0
    %383 = vmatpush1.bf16.msra.mxu0 0
    %384 = vmatprep.subr.bf16.mxu0 0
    %385 = vmatpush1.bf16.msra.mxu0 0
    %386 = vmatprep.subr.bf16.mxu0 0
    %387 = vmatpush1.bf16.msra.mxu0 0
    %388 = vmatprep.mubr.bf16.mxu0 0
    %389 = vmatmul.mubr.bf16.gmra.mrb[0].mxu0 %v355
    %v390 = vpop.f32.mrb[0].mxu0
    %v391 = vadd.f32 0.0, %v390
    %v392 = vpop.f32.mrb[0].mxu0
    %v393 = vadd.f32 0.0, %v392
    %v394 = vpop.f32.mrb[0].mxu0
    %v395 = vpop.f32.mrb[0].mxu0
    %396 = vdwg.mxu0
    %397 = vmatprep.subr.bf16.mxu0 %v167
    %398 = vmatpush1.bf16.msra.mxu0 %v166
    %399 = vmatprep.subr.bf16.mxu0 %v171
    %400 = vmatpush1.bf16.msra.mxu0 %v170
    %401 = vmatprep.subr.bf16.mxu0 %v175
    %402 = vmatpush1.bf16.msra.mxu0 %v174
    %403 = vmatprep.subr.bf16.mxu0 %v179
    %404 = vmatpush1.bf16.msra.mxu0 %v178
    %405 = vmatprep.subr.bf16.mxu0 %v183
    %406 = vmatpush1.bf16.msra.mxu0 %v182
    %407 = vmatprep.subr.bf16.mxu0 %v187
    %408 = vmatpush1.bf16.msra.mxu0 %v186
    %409 = vmatprep.subr.bf16.mxu0 %v191
    %410 = vmatpush1.bf16.msra.mxu0 %v190
    %411 = vmatprep.subr.bf16.mxu0 %v195
    %412 = vmatpush1.bf16.msra.mxu0 %v194
    %413 = vmatprep.subr.bf16.mxu0 0
    %414 = vmatpush1.bf16.msra.mxu0 0
    %415 = vmatprep.subr.bf16.mxu0 0
    %416 = vmatpush1.bf16.msra.mxu0 0
    %417 = vmatprep.subr.bf16.mxu0 0
    %418 = vmatpush1.bf16.msra.mxu0 0
    %419 = vmatprep.subr.bf16.mxu0 0
    %420 = vmatpush1.bf16.msra.mxu0 0
    %421 = vmatprep.subr.bf16.mxu0 0
    %422 = vmatpush1.bf16.msra.mxu0 0
    %423 = vmatprep.subr.bf16.mxu0 0
    %424 = vmatpush1.bf16.msra.mxu0 0
    %425 = vmatprep.subr.bf16.mxu0 0
    %426 = vmatpush1.bf16.msra.mxu0 0
    %427 = vmatprep.subr.bf16.mxu0 0
    %428 = vmatpush1.bf16.msra.mxu0 0
    %429 = vmatprep.mubr.bf16.mxu0 0
    %430 = vmatmul.mubr.bf16.gmra.mrb[0].mxu0 %v355
    %v431 = vpop.f32.mrb[0].mxu0
    %v432 = vadd.f32 0.0, %v431
    %v433 = vpop.f32.mrb[0].mxu0
    %v434 = vadd.f32 0.0, %v433
    %v435 = vpop.f32.mrb[0].mxu0
    %v436 = vpop.f32.mrb[0].mxu0
    %437 = vdwg.mxu0
    %v438 = vadd.f32 %v351, %v391
    %v439 = vadd.f32 %v352, %v393
    %v440 = vadd.f32 %v353, %v432
    %v441 = vadd.f32 %v354, %v434
    %v442 = vxor.u32 %v438, 2147483648
    %v443 = vmul.f32 %v442, 1.442695
    %v444 = vpow.pop %v443
    %v445 = vadd.f32 %v444, 1.0
    %v446 = vrcp.pop %v445
    %v447 = vmul.f32 1.0, %v446
    %v448 = vmul.f32 %v447, %v346
    %v449 = vxor.u32 %v439, 2147483648
    %v450 = vmul.f32 %v449, 1.442695
    %v451 = vpow.pop %v450
    %v452 = vadd.f32 %v451, 1.0
    %v453 = vrcp.pop %v452
    %v454 = vmul.f32 1.0, %v453
    %v455 = vtanh.pop %v441
    %v456 = vmul.f32 %v454, %v455
    %v457 = vadd.f32 %v448, %v456
    %v458 = vxor.u32 %v440, 2147483648
    %v459 = vmul.f32 %v458, 1.442695
    %v460 = vpow.pop %v459
    %v461 = vadd.f32 %v460, 1.0
    %v462 = vrcp.pop %v461
    %v463 = vmul.f32 1.0, %v462
    %v464 = vtanh.pop %v457
    %v465 = vmul.f32 %v463, %v464
    %s466 = sadd.s32 %s58, 1
    %v467 = vstv %s466
    %vm468 = vcmp.lt.s32.totalorder %v467, %v25
    %v469 = vsel %vm468, 1, 0
    %470 = vset.pattern.permute.xlu0 0
    %471 = vperm.xlu0 %470, %v469
    %v472 = vpop.permute.xlu0 %471
    %vm473 = vcmp.eq.s32.totalorder %v472, 1
    %v474 = vsel %vm473, %v465, %v345
    %v475 = vsel %vm473, %v457, %v346
    %s476 = scalar_lea.vmem %s3, 8
    %477 = vst [vmem:[%s476] sm:$0xff] %v474
    %s478 = scalar_lea.vmem %s1, 32
    %v479 = vld [vmem:[%s478] sm:$0xff]
    %v480 = vld [vmem:[%s478 + $0x8] sm:$0xff]
    %v481 = vunpack.c.l.bf16 %v479
    %v482 = vunpack.c.h.bf16 %v479
    %v483 = vunpack.c.l.bf16 %v480
    %v484 = vunpack.c.h.bf16 %v480
    %v485 = vpack.c.bf16 %v474, %v474
    %486 = vmatprep.subr.bf16.mxu0 %v165
    %487 = vmatpush1.bf16.msra.mxu0 %v164
    %488 = vmatprep.subr.bf16.mxu0 %v169
    %489 = vmatpush1.bf16.msra.mxu0 %v168
    %490 = vmatprep.subr.bf16.mxu0 %v173
    %491 = vmatpush1.bf16.msra.mxu0 %v172
    %492 = vmatprep.subr.bf16.mxu0 %v177
    %493 = vmatpush1.bf16.msra.mxu0 %v176
    %494 = vmatprep.subr.bf16.mxu0 %v181
    %495 = vmatpush1.bf16.msra.mxu0 %v180
    %496 = vmatprep.subr.bf16.mxu0 %v185
    %497 = vmatpush1.bf16.msra.mxu0 %v184
    %498 = vmatprep.subr.bf16.mxu0 %v189
    %499 = vmatpush1.bf16.msra.mxu0 %v188
    %500 = vmatprep.subr.bf16.mxu0 %v193
    %501 = vmatpush1.bf16.msra.mxu0 %v192
    %502 = vmatprep.subr.bf16.mxu0 0
    %503 = vmatpush1.bf16.msra.mxu0 0
    %504 = vmatprep.subr.bf16.mxu0 0
    %505 = vmatpush1.bf16.msra.mxu0 0
    %506 = vmatprep.subr.bf16.mxu0 0
    %507 = vmatpush1.bf16.msra.mxu0 0
    %508 = vmatprep.subr.bf16.mxu0 0
    %509 = vmatpush1.bf16.msra.mxu0 0
    %510 = vmatprep.subr.bf16.mxu0 0
    %511 = vmatpush1.bf16.msra.mxu0 0
    %512 = vmatprep.subr.bf16.mxu0 0
    %513 = vmatpush1.bf16.msra.mxu0 0
    %514 = vmatprep.subr.bf16.mxu0 0
    %515 = vmatpush1.bf16.msra.mxu0 0
    %516 = vmatprep.subr.bf16.mxu0 0
    %517 = vmatpush1.bf16.msra.mxu0 0
    %518 = vmatprep.mubr.bf16.mxu0 0
    %519 = vmatmul.mubr.bf16.gmra.mrb[0].mxu0 %v485
    %v520 = vpop.f32.mrb[0].mxu0
    %v521 = vadd.f32 0.0, %v520
    %v522 = vpop.f32.mrb[0].mxu0
    %v523 = vadd.f32 0.0, %v522
    %v524 = vpop.f32.mrb[0].mxu0
    %v525 = vpop.f32.mrb[0].mxu0
    %526 = vdwg.mxu0
    %527 = vmatprep.subr.bf16.mxu0 %v167
    %528 = vmatpush1.bf16.msra.mxu0 %v166
    %529 = vmatprep.subr.bf16.mxu0 %v171
    %530 = vmatpush1.bf16.msra.mxu0 %v170
    %531 = vmatprep.subr.bf16.mxu0 %v175
    %532 = vmatpush1.bf16.msra.mxu0 %v174
    %533 = vmatprep.subr.bf16.mxu0 %v179
    %534 = vmatpush1.bf16.msra.mxu0 %v178
    %535 = vmatprep.subr.bf16.mxu0 %v183
    %536 = vmatpush1.bf16.msra.mxu0 %v182
    %537 = vmatprep.subr.bf16.mxu0 %v187
    %538 = vmatpush1.bf16.msra.mxu0 %v186
    %539 = vmatprep.subr.bf16.mxu0 %v191
    %540 = vmatpush1.bf16.msra.mxu0 %v190
    %541 = vmatprep.subr.bf16.mxu0 %v195
    %542 = vmatpush1.bf16.msra.mxu0 %v194
    %543 = vmatprep.subr.bf16.mxu0 0
    %544 = vmatpush1.bf16.msra.mxu0 0
    %545 = vmatprep.subr.bf16.mxu0 0
    %546 = vmatpush1.bf16.msra.mxu0 0
    %547 = vmatprep.subr.bf16.mxu0 0
    %548 = vmatpush1.bf16.msra.mxu0 0
    %549 = vmatprep.subr.bf16.mxu0 0
    %550 = vmatpush1.bf16.msra.mxu0 0
    %551 = vmatprep.subr.bf16.mxu0 0
    %552 = vmatpush1.bf16.msra.mxu0 0
    %553 = vmatprep.subr.bf16.mxu0 0
    %554 = vmatpush1.bf16.msra.mxu0 0
    %555 = vmatprep.subr.bf16.mxu0 0
    %556 = vmatpush1.bf16.msra.mxu0 0
    %557 = vmatprep.subr.bf16.mxu0 0
    %558 = vmatpush1.bf16.msra.mxu0 0
    %559 = vmatprep.mubr.bf16.mxu0 0
    %560 = vmatmul.mubr.bf16.gmra.mrb[0].mxu0 %v485
    %v561 = vpop.f32.mrb[0].mxu0
    %v562 = vadd.f32 0.0, %v561
    %v563 = vpop.f32.mrb[0].mxu0
    %v564 = vadd.f32 0.0, %v563
    %v565 = vpop.f32.mrb[0].mxu0
    %v566 = vpop.f32.mrb[0].mxu0
    %567 = vdwg.mxu0
    %v568 = vadd.f32 %v481, %v521
    %v569 = vadd.f32 %v482, %v523
    %v570 = vadd.f32 %v483, %v562
    %v571 = vadd.f32 %v484, %v564
    %v572 = vxor.u32 %v568, 2147483648
    %v573 = vmul.f32 %v572, 1.442695
    %v574 = vpow.pop %v573
    %v575 = vadd.f32 %v574, 1.0
    %v576 = vrcp.pop %v575
    %v577 = vmul.f32 1.0, %v576
    %v578 = vmul.f32 %v577, %v475
    %v579 = vxor.u32 %v569, 2147483648
    %v580 = vmul.f32 %v579, 1.442695
    %v581 = vpow.pop %v580
    %v582 = vadd.f32 %v581, 1.0
    %v583 = vrcp.pop %v582
    %v584 = vmul.f32 1.0, %v583
    %v585 = vtanh.pop %v571
    %v586 = vmul.f32 %v584, %v585
    %v587 = vadd.f32 %v578, %v586
    %v588 = vxor.u32 %v570, 2147483648
    %v589 = vmul.f32 %v588, 1.442695
    %v590 = vpow.pop %v589
    %v591 = vadd.f32 %v590, 1.0
    %v592 = vrcp.pop %v591
    %v593 = vmul.f32 1.0, %v592
    %v594 = vtanh.pop %v587
    %v595 = vmul.f32 %v593, %v594
    %s596 = sadd.s32 %s58, 2
    %v597 = vstv %s596
    %vm598 = vcmp.lt.s32.totalorder %v597, %v25
    %v599 = vsel %vm598, 1, 0
    %600 = vset.pattern.permute.xlu0 0
    %601 = vperm.xlu0 %600, %v599
    %v602 = vpop.permute.xlu0 %601
    %vm603 = vcmp.eq.s32.totalorder %v602, 1
    %v604 = vsel %vm603, %v595, %v474
    %v605 = vsel %vm603, %v587, %v475
    %s606 = scalar_lea.vmem %s3, 16
    %607 = vst [vmem:[%s606] sm:$0xff] %v604
    %s608 = scalar_lea.vmem %s1, 48
    %v609 = vld [vmem:[%s608] sm:$0xff]
    %v610 = vld [vmem:[%s608 + $0x8] sm:$0xff]
    %v611 = vunpack.c.l.bf16 %v609
    %v612 = vunpack.c.h.bf16 %v609
    %v613 = vunpack.c.l.bf16 %v610
    %v614 = vunpack.c.h.bf16 %v610
    %v615 = vpack.c.bf16 %v604, %v604
    %616 = vmatprep.subr.bf16.mxu0 %v165
    %617 = vmatpush1.bf16.msra.mxu0 %v164
    %618 = vmatprep.subr.bf16.mxu0 %v169
    %619 = vmatpush1.bf16.msra.mxu0 %v168
    %620 = vmatprep.subr.bf16.mxu0 %v173
    %621 = vmatpush1.bf16.msra.mxu0 %v172
    %622 = vmatprep.subr.bf16.mxu0 %v177
    %623 = vmatpush1.bf16.msra.mxu0 %v176
    %624 = vmatprep.subr.bf16.mxu0 %v181
    %625 = vmatpush1.bf16.msra.mxu0 %v180
    %626 = vmatprep.subr.bf16.mxu0 %v185
    %627 = vmatpush1.bf16.msra.mxu0 %v184
    %628 = vmatprep.subr.bf16.mxu0 %v189
    %629 = vmatpush1.bf16.msra.mxu0 %v188
    %630 = vmatprep.subr.bf16.mxu0 %v193
    %631 = vmatpush1.bf16.msra.mxu0 %v192
    %632 = vmatprep.subr.bf16.mxu0 0
    %633 = vmatpush1.bf16.msra.mxu0 0
    %634 = vmatprep.subr.bf16.mxu0 0
    %635 = vmatpush1.bf16.msra.mxu0 0
    %636 = vmatprep.subr.bf16.mxu0 0
    %637 = vmatpush1.bf16.msra.mxu0 0
    %638 = vmatprep.subr.bf16.mxu0 0
    %639 = vmatpush1.bf16.msra.mxu0 0
    %640 = vmatprep.subr.bf16.mxu0 0
    %641 = vmatpush1.bf16.msra.mxu0 0
    %642 = vmatprep.subr.bf16.mxu0 0
    %643 = vmatpush1.bf16.msra.mxu0 0
    %644 = vmatprep.subr.bf16.mxu0 0
    %645 = vmatpush1.bf16.msra.mxu0 0
    %646 = vmatprep.subr.bf16.mxu0 0
    %647 = vmatpush1.bf16.msra.mxu0 0
    %648 = vmatprep.mubr.bf16.mxu0 0
    %649 = vmatmul.mubr.bf16.gmra.mrb[0].mxu0 %v615
    %v650 = vpop.f32.mrb[0].mxu0
    %v651 = vadd.f32 0.0, %v650
    %v652 = vpop.f32.mrb[0].mxu0
    %v653 = vadd.f32 0.0, %v652
    %v654 = vpop.f32.mrb[0].mxu0
    %v655 = vpop.f32.mrb[0].mxu0
    %656 = vdwg.mxu0
    %657 = vmatprep.subr.bf16.mxu0 %v167
    %658 = vmatpush1.bf16.msra.mxu0 %v166
    %659 = vmatprep.subr.bf16.mxu0 %v171
    %660 = vmatpush1.bf16.msra.mxu0 %v170
    %661 = vmatprep.subr.bf16.mxu0 %v175
    %662 = vmatpush1.bf16.msra.mxu0 %v174
    %663 = vmatprep.subr.bf16.mxu0 %v179
    %664 = vmatpush1.bf16.msra.mxu0 %v178
    %665 = vmatprep.subr.bf16.mxu0 %v183
    %666 = vmatpush1.bf16.msra.mxu0 %v182
    %667 = vmatprep.subr.bf16.mxu0 %v187
    %668 = vmatpush1.bf16.msra.mxu0 %v186
    %669 = vmatprep.subr.bf16.mxu0 %v191
    %670 = vmatpush1.bf16.msra.mxu0 %v190
    %671 = vmatprep.subr.bf16.mxu0 %v195
    %672 = vmatpush1.bf16.msra.mxu0 %v194
    %673 = vmatprep.subr.bf16.mxu0 0
    %674 = vmatpush1.bf16.msra.mxu0 0
    %675 = vmatprep.subr.bf16.mxu0 0
    %676 = vmatpush1.bf16.msra.mxu0 0
    %677 = vmatprep.subr.bf16.mxu0 0
    %678 = vmatpush1.bf16.msra.mxu0 0
    %679 = vmatprep.subr.bf16.mxu0 0
    %680 = vmatpush1.bf16.msra.mxu0 0
    %681 = vmatprep.subr.bf16.mxu0 0
    %682 = vmatpush1.bf16.msra.mxu0 0
    %683 = vmatprep.subr.bf16.mxu0 0
    %684 = vmatpush1.bf16.msra.mxu0 0
    %685 = vmatprep.subr.bf16.mxu0 0
    %686 = vmatpush1.bf16.msra.mxu0 0
    %687 = vmatprep.subr.bf16.mxu0 0
    %688 = vmatpush1.bf16.msra.mxu0 0
    %689 = vmatprep.mubr.bf16.mxu0 0
    %690 = vmatmul.mubr.bf16.gmra.mrb[0].mxu0 %v615
    %v691 = vpop.f32.mrb[0].mxu0
    %v692 = vadd.f32 0.0, %v691
    %v693 = vpop.f32.mrb[0].mxu0
    %v694 = vadd.f32 0.0, %v693
    %v695 = vpop.f32.mrb[0].mxu0
    %v696 = vpop.f32.mrb[0].mxu0
    %697 = vdwg.mxu0
    %v698 = vadd.f32 %v611, %v651
    %v699 = vadd.f32 %v612, %v653
    %v700 = vadd.f32 %v613, %v692
    %v701 = vadd.f32 %v614, %v694
    %v702 = vxor.u32 %v698, 2147483648
    %v703 = vmul.f32 %v702, 1.442695
    %v704 = vpow.pop %v703
    %v705 = vadd.f32 %v704, 1.0
    %v706 = vrcp.pop %v705
    %v707 = vmul.f32 1.0, %v706
    %v708 = vmul.f32 %v707, %v605
    %v709 = vxor.u32 %v699, 2147483648
    %v710 = vmul.f32 %v709, 1.442695
    %v711 = vpow.pop %v710
    %v712 = vadd.f32 %v711, 1.0
    %v713 = vrcp.pop %v712
    %v714 = vmul.f32 1.0, %v713
    %v715 = vtanh.pop %v701
    %v716 = vmul.f32 %v714, %v715
    %v717 = vadd.f32 %v708, %v716
    %v718 = vxor.u32 %v700, 2147483648
    %v719 = vmul.f32 %v718, 1.442695
    %v720 = vpow.pop %v719
    %v721 = vadd.f32 %v720, 1.0
    %v722 = vrcp.pop %v721
    %v723 = vmul.f32 1.0, %v722
    %v724 = vtanh.pop %v717
    %v725 = vmul.f32 %v723, %v724
    %s726 = sadd.s32 %s58, 3
    %v727 = vstv %s726
    %vm728 = vcmp.lt.s32.totalorder %v727, %v25
    %v729 = vsel %vm728, 1, 0
    %730 = vset.pattern.permute.xlu0 0
    %731 = vperm.xlu0 %730, %v729
    %v732 = vpop.permute.xlu0 %731
    %vm733 = vcmp.eq.s32.totalorder %v732, 1
    %v734 = vsel %vm733, %v725, %v604
    %v735 = vsel %vm733, %v717, %v605
    %s736 = scalar_lea.vmem %s3, 24
    %737 = vst [vmem:[%s736] sm:$0xff] %v734
    %s738 = scalar_lea.vmem %s1, 64
    %v739 = vld [vmem:[%s738] sm:$0xff]
    %v740 = vld [vmem:[%s738 + $0x8] sm:$0xff]
    %v741 = vunpack.c.l.bf16 %v739
    %v742 = vunpack.c.h.bf16 %v739
    %v743 = vunpack.c.l.bf16 %v740
    %v744 = vunpack.c.h.bf16 %v740
    %v745 = vpack.c.bf16 %v734, %v734
    %746 = vmatprep.subr.bf16.mxu0 %v165
    %747 = vmatpush1.bf16.msra.mxu0 %v164
    %748 = vmatprep.subr.bf16.mxu0 %v169
    %749 = vmatpush1.bf16.msra.mxu0 %v168
    %750 = vmatprep.subr.bf16.mxu0 %v173
    %751 = vmatpush1.bf16.msra.mxu0 %v172
    %752 = vmatprep.subr.bf16.mxu0 %v177
    %753 = vmatpush1.bf16.msra.mxu0 %v176
    %754 = vmatprep.subr.bf16.mxu0 %v181
    %755 = vmatpush1.bf16.msra.mxu0 %v180
    %756 = vmatprep.subr.bf16.mxu0 %v185
    %757 = vmatpush1.bf16.msra.mxu0 %v184
    %758 = vmatprep.subr.bf16.mxu0 %v189
    %759 = vmatpush1.bf16.msra.mxu0 %v188
    %760 = vmatprep.subr.bf16.mxu0 %v193
    %761 = vmatpush1.bf16.msra.mxu0 %v192
    %762 = vmatprep.subr.bf16.mxu0 0
    %763 = vmatpush1.bf16.msra.mxu0 0
    %764 = vmatprep.subr.bf16.mxu0 0
    %765 = vmatpush1.bf16.msra.mxu0 0
    %766 = vmatprep.subr.bf16.mxu0 0
    %767 = vmatpush1.bf16.msra.mxu0 0
    %768 = vmatprep.subr.bf16.mxu0 0
    %769 = vmatpush1.bf16.msra.mxu0 0
    %770 = vmatprep.subr.bf16.mxu0 0
    %771 = vmatpush1.bf16.msra.mxu0 0
    %772 = vmatprep.subr.bf16.mxu0 0
    %773 = vmatpush1.bf16.msra.mxu0 0
    %774 = vmatprep.subr.bf16.mxu0 0
    %775 = vmatpush1.bf16.msra.mxu0 0
    %776 = vmatprep.subr.bf16.mxu0 0
    %777 = vmatpush1.bf16.msra.mxu0 0
    %778 = vmatprep.mubr.bf16.mxu0 0
    %779 = vmatmul.mubr.bf16.gmra.mrb[0].mxu0 %v745
    %v780 = vpop.f32.mrb[0].mxu0
    %v781 = vadd.f32 0.0, %v780
    %v782 = vpop.f32.mrb[0].mxu0
    %v783 = vadd.f32 0.0, %v782
    %v784 = vpop.f32.mrb[0].mxu0
    %v785 = vpop.f32.mrb[0].mxu0
    %786 = vdwg.mxu0
    %787 = vmatprep.subr.bf16.mxu0 %v167
    %788 = vmatpush1.bf16.msra.mxu0 %v166
    %789 = vmatprep.subr.bf16.mxu0 %v171
    %790 = vmatpush1.bf16.msra.mxu0 %v170
    %791 = vmatprep.subr.bf16.mxu0 %v175
    %792 = vmatpush1.bf16.msra.mxu0 %v174
    %793 = vmatprep.subr.bf16.mxu0 %v179
    %794 = vmatpush1.bf16.msra.mxu0 %v178
    %795 = vmatprep.subr.bf16.mxu0 %v183
    %796 = vmatpush1.bf16.msra.mxu0 %v182
    %797 = vmatprep.subr.bf16.mxu0 %v187
    %798 = vmatpush1.bf16.msra.mxu0 %v186
    %799 = vmatprep.subr.bf16.mxu0 %v191
    %800 = vmatpush1.bf16.msra.mxu0 %v190
    %801 = vmatprep.subr.bf16.mxu0 %v195
    %802 = vmatpush1.bf16.msra.mxu0 %v194
    %803 = vmatprep.subr.bf16.mxu0 0
    %804 = vmatpush1.bf16.msra.mxu0 0
    %805 = vmatprep.subr.bf16.mxu0 0
    %806 = vmatpush1.bf16.msra.mxu0 0
    %807 = vmatprep.subr.bf16.mxu0 0
    %808 = vmatpush1.bf16.msra.mxu0 0
    %809 = vmatprep.subr.bf16.mxu0 0
    %810 = vmatpush1.bf16.msra.mxu0 0
    %811 = vmatprep.subr.bf16.mxu0 0
    %812 = vmatpush1.bf16.msra.mxu0 0
    %813 = vmatprep.subr.bf16.mxu0 0
    %814 = vmatpush1.bf16.msra.mxu0 0
    %815 = vmatprep.subr.bf16.mxu0 0
    %816 = vmatpush1.bf16.msra.mxu0 0
    %817 = vmatprep.subr.bf16.mxu0 0
    %818 = vmatpush1.bf16.msra.mxu0 0
    %819 = vmatprep.mubr.bf16.mxu0 0
    %820 = vmatmul.mubr.bf16.gmra.mrb[0].mxu0 %v745
    %v821 = vpop.f32.mrb[0].mxu0
    %v822 = vadd.f32 0.0, %v821
    %v823 = vpop.f32.mrb[0].mxu0
    %v824 = vadd.f32 0.0, %v823
    %v825 = vpop.f32.mrb[0].mxu0
    %v826 = vpop.f32.mrb[0].mxu0
    %827 = vdwg.mxu0
    %v828 = vadd.f32 %v741, %v781
    %v829 = vadd.f32 %v742, %v783
    %v830 = vadd.f32 %v743, %v822
    %v831 = vadd.f32 %v744, %v824
    %v832 = vxor.u32 %v828, 2147483648
    %v833 = vmul.f32 %v832, 1.442695
    %v834 = vpow.pop %v833
    %v835 = vadd.f32 %v834, 1.0
    %v836 = vrcp.pop %v835
    %v837 = vmul.f32 1.0, %v836
    %v838 = vmul.f32 %v837, %v735
    %v839 = vxor.u32 %v829, 2147483648
    %v840 = vmul.f32 %v839, 1.442695
    %v841 = vpow.pop %v840
    %v842 = vadd.f32 %v841, 1.0
    %v843 = vrcp.pop %v842
    %v844 = vmul.f32 1.0, %v843
    %v845 = vtanh.pop %v831
    %v846 = vmul.f32 %v844, %v845
    %v847 = vadd.f32 %v838, %v846
    %v848 = vxor.u32 %v830, 2147483648
    %v849 = vmul.f32 %v848, 1.442695
    %v850 = vpow.pop %v849
    %v851 = vadd.f32 %v850, 1.0
    %v852 = vrcp.pop %v851
    %v853 = vmul.f32 1.0, %v852
    %v854 = vtanh.pop %v847
    %v855 = vmul.f32 %v853, %v854
    %s856 = sadd.s32 %s58, 4
    %v857 = vstv %s856
    %vm858 = vcmp.lt.s32.totalorder %v857, %v25
    %v859 = vsel %vm858, 1, 0
    %860 = vset.pattern.permute.xlu0 0
    %861 = vperm.xlu0 %860, %v859
    %v862 = vpop.permute.xlu0 %861
    %vm863 = vcmp.eq.s32.totalorder %v862, 1
    %v864 = vsel %vm863, %v855, %v734
    %v865 = vsel %vm863, %v847, %v735
    %s866 = scalar_lea.vmem %s3, 32
    %867 = vst [vmem:[%s866] sm:$0xff] %v864
    %s868 = scalar_lea.vmem %s1, 80
    %v869 = vld [vmem:[%s868] sm:$0xff]
    %v870 = vld [vmem:[%s868 + $0x8] sm:$0xff]
    %v871 = vunpack.c.l.bf16 %v869
    %v872 = vunpack.c.h.bf16 %v869
    %v873 = vunpack.c.l.bf16 %v870
    %v874 = vunpack.c.h.bf16 %v870
    %v875 = vpack.c.bf16 %v864, %v864
    %876 = vmatprep.subr.bf16.mxu0 %v165
    %877 = vmatpush1.bf16.msra.mxu0 %v164
    %878 = vmatprep.subr.bf16.mxu0 %v169
    %879 = vmatpush1.bf16.msra.mxu0 %v168
    %880 = vmatprep.subr.bf16.mxu0 %v173
    %881 = vmatpush1.bf16.msra.mxu0 %v172
    %882 = vmatprep.subr.bf16.mxu0 %v177
    %883 = vmatpush1.bf16.msra.mxu0 %v176
    %884 = vmatprep.subr.bf16.mxu0 %v181
    %885 = vmatpush1.bf16.msra.mxu0 %v180
    %886 = vmatprep.subr.bf16.mxu0 %v185
    %887 = vmatpush1.bf16.msra.mxu0 %v184
    %888 = vmatprep.subr.bf16.mxu0 %v189
    %889 = vmatpush1.bf16.msra.mxu0 %v188
    %890 = vmatprep.subr.bf16.mxu0 %v193
    %891 = vmatpush1.bf16.msra.mxu0 %v192
    %892 = vmatprep.subr.bf16.mxu0 0
    %893 = vmatpush1.bf16.msra.mxu0 0
    %894 = vmatprep.subr.bf16.mxu0 0
    %895 = vmatpush1.bf16.msra.mxu0 0
    %896 = vmatprep.subr.bf16.mxu0 0
    %897 = vmatpush1.bf16.msra.mxu0 0
    %898 = vmatprep.subr.bf16.mxu0 0
    %899 = vmatpush1.bf16.msra.mxu0 0
    %900 = vmatprep.subr.bf16.mxu0 0
    %901 = vmatpush1.bf16.msra.mxu0 0
    %902 = vmatprep.subr.bf16.mxu0 0
    %903 = vmatpush1.bf16.msra.mxu0 0
    %904 = vmatprep.subr.bf16.mxu0 0
    %905 = vmatpush1.bf16.msra.mxu0 0
    %906 = vmatprep.subr.bf16.mxu0 0
    %907 = vmatpush1.bf16.msra.mxu0 0
    %908 = vmatprep.mubr.bf16.mxu0 0
    %909 = vmatmul.mubr.bf16.gmra.mrb[0].mxu0 %v875
    %v910 = vpop.f32.mrb[0].mxu0
    %v911 = vadd.f32 0.0, %v910
    %v912 = vpop.f32.mrb[0].mxu0
    %v913 = vadd.f32 0.0, %v912
    %v914 = vpop.f32.mrb[0].mxu0
    %v915 = vpop.f32.mrb[0].mxu0
    %916 = vdwg.mxu0
    %917 = vmatprep.subr.bf16.mxu0 %v167
    %918 = vmatpush1.bf16.msra.mxu0 %v166
    %919 = vmatprep.subr.bf16.mxu0 %v171
    %920 = vmatpush1.bf16.msra.mxu0 %v170
    %921 = vmatprep.subr.bf16.mxu0 %v175
    %922 = vmatpush1.bf16.msra.mxu0 %v174
    %923 = vmatprep.subr.bf16.mxu0 %v179
    %924 = vmatpush1.bf16.msra.mxu0 %v178
    %925 = vmatprep.subr.bf16.mxu0 %v183
    %926 = vmatpush1.bf16.msra.mxu0 %v182
    %927 = vmatprep.subr.bf16.mxu0 %v187
    %928 = vmatpush1.bf16.msra.mxu0 %v186
    %929 = vmatprep.subr.bf16.mxu0 %v191
    %930 = vmatpush1.bf16.msra.mxu0 %v190
    %931 = vmatprep.subr.bf16.mxu0 %v195
    %932 = vmatpush1.bf16.msra.mxu0 %v194
    %933 = vmatprep.subr.bf16.mxu0 0
    %934 = vmatpush1.bf16.msra.mxu0 0
    %935 = vmatprep.subr.bf16.mxu0 0
    %936 = vmatpush1.bf16.msra.mxu0 0
    %937 = vmatprep.subr.bf16.mxu0 0
    %938 = vmatpush1.bf16.msra.mxu0 0
    %939 = vmatprep.subr.bf16.mxu0 0
    %940 = vmatpush1.bf16.msra.mxu0 0
    %941 = vmatprep.subr.bf16.mxu0 0
    %942 = vmatpush1.bf16.msra.mxu0 0
    %943 = vmatprep.subr.bf16.mxu0 0
    %944 = vmatpush1.bf16.msra.mxu0 0
    %945 = vmatprep.subr.bf16.mxu0 0
    %946 = vmatpush1.bf16.msra.mxu0 0
    %947 = vmatprep.subr.bf16.mxu0 0
    %948 = vmatpush1.bf16.msra.mxu0 0
    %949 = vmatprep.mubr.bf16.mxu0 0
    %950 = vmatmul.mubr.bf16.gmra.mrb[0].mxu0 %v875
    %v951 = vpop.f32.mrb[0].mxu0
    %v952 = vadd.f32 0.0, %v951
    %v953 = vpop.f32.mrb[0].mxu0
    %v954 = vadd.f32 0.0, %v953
    %v955 = vpop.f32.mrb[0].mxu0
    %v956 = vpop.f32.mrb[0].mxu0
    %957 = vdwg.mxu0
    %v958 = vadd.f32 %v871, %v911
    %v959 = vadd.f32 %v872, %v913
    %v960 = vadd.f32 %v873, %v952
    %v961 = vadd.f32 %v874, %v954
    %v962 = vxor.u32 %v958, 2147483648
    %v963 = vmul.f32 %v962, 1.442695
    %v964 = vpow.pop %v963
    %v965 = vadd.f32 %v964, 1.0
    %v966 = vrcp.pop %v965
    %v967 = vmul.f32 1.0, %v966
    %v968 = vmul.f32 %v967, %v865
    %v969 = vxor.u32 %v959, 2147483648
    %v970 = vmul.f32 %v969, 1.442695
    %v971 = vpow.pop %v970
    %v972 = vadd.f32 %v971, 1.0
    %v973 = vrcp.pop %v972
    %v974 = vmul.f32 1.0, %v973
    %v975 = vtanh.pop %v961
    %v976 = vmul.f32 %v974, %v975
    %v977 = vadd.f32 %v968, %v976
    %v978 = vxor.u32 %v960, 2147483648
    %v979 = vmul.f32 %v978, 1.442695
    %v980 = vpow.pop %v979
    %v981 = vadd.f32 %v980, 1.0
    %v982 = vrcp.pop %v981
    %v983 = vmul.f32 1.0, %v982
    %v984 = vtanh.pop %v977
    %v985 = vmul.f32 %v983, %v984
    %s986 = sadd.s32 %s58, 5
    %v987 = vstv %s986
    %vm988 = vcmp.lt.s32.totalorder %v987, %v25
    %v989 = vsel %vm988, 1, 0
    %990 = vset.pattern.permute.xlu0 0
    %991 = vperm.xlu0 %990, %v989
    %v992 = vpop.permute.xlu0 %991
    %vm993 = vcmp.eq.s32.totalorder %v992, 1
    %v994 = vsel %vm993, %v985, %v864
    %v995 = vsel %vm993, %v977, %v865
    %s996 = scalar_lea.vmem %s3, 40
    %997 = vst [vmem:[%s996] sm:$0xff] %v994
    %s998 = scalar_lea.vmem %s1, 96
    %v999 = vld [vmem:[%s998] sm:$0xff]
    %v1000 = vld [vmem:[%s998 + $0x8] sm:$0xff]
    %v1001 = vunpack.c.l.bf16 %v999
    %v1002 = vunpack.c.h.bf16 %v999
    %v1003 = vunpack.c.l.bf16 %v1000
    %v1004 = vunpack.c.h.bf16 %v1000
    %v1005 = vpack.c.bf16 %v994, %v994
    %1006 = vmatprep.subr.bf16.mxu0 %v165
    %1007 = vmatpush1.bf16.msra.mxu0 %v164
    %1008 = vmatprep.subr.bf16.mxu0 %v169
    %1009 = vmatpush1.bf16.msra.mxu0 %v168
    %1010 = vmatprep.subr.bf16.mxu0 %v173
    %1011 = vmatpush1.bf16.msra.mxu0 %v172
    %1012 = vmatprep.subr.bf16.mxu0 %v177
    %1013 = vmatpush1.bf16.msra.mxu0 %v176
    %1014 = vmatprep.subr.bf16.mxu0 %v181
    %1015 = vmatpush1.bf16.msra.mxu0 %v180
    %1016 = vmatprep.subr.bf16.mxu0 %v185
    %1017 = vmatpush1.bf16.msra.mxu0 %v184
    %1018 = vmatprep.subr.bf16.mxu0 %v189
    %1019 = vmatpush1.bf16.msra.mxu0 %v188
    %1020 = vmatprep.subr.bf16.mxu0 %v193
    %1021 = vmatpush1.bf16.msra.mxu0 %v192
    %1022 = vmatprep.subr.bf16.mxu0 0
    %1023 = vmatpush1.bf16.msra.mxu0 0
    %1024 = vmatprep.subr.bf16.mxu0 0
    %1025 = vmatpush1.bf16.msra.mxu0 0
    %1026 = vmatprep.subr.bf16.mxu0 0
    %1027 = vmatpush1.bf16.msra.mxu0 0
    %1028 = vmatprep.subr.bf16.mxu0 0
    %1029 = vmatpush1.bf16.msra.mxu0 0
    %1030 = vmatprep.subr.bf16.mxu0 0
    %1031 = vmatpush1.bf16.msra.mxu0 0
    %1032 = vmatprep.subr.bf16.mxu0 0
    %1033 = vmatpush1.bf16.msra.mxu0 0
    %1034 = vmatprep.subr.bf16.mxu0 0
    %1035 = vmatpush1.bf16.msra.mxu0 0
    %1036 = vmatprep.subr.bf16.mxu0 0
    %1037 = vmatpush1.bf16.msra.mxu0 0
    %1038 = vmatprep.mubr.bf16.mxu0 0
    %1039 = vmatmul.mubr.bf16.gmra.mrb[0].mxu0 %v1005
    %v1040 = vpop.f32.mrb[0].mxu0
    %v1041 = vadd.f32 0.0, %v1040
    %v1042 = vpop.f32.mrb[0].mxu0
    %v1043 = vadd.f32 0.0, %v1042
    %v1044 = vpop.f32.mrb[0].mxu0
    %v1045 = vpop.f32.mrb[0].mxu0
    %1046 = vdwg.mxu0
    %1047 = vmatprep.subr.bf16.mxu0 %v167
    %1048 = vmatpush1.bf16.msra.mxu0 %v166
    %1049 = vmatprep.subr.bf16.mxu0 %v171
    %1050 = vmatpush1.bf16.msra.mxu0 %v170
    %1051 = vmatprep.subr.bf16.mxu0 %v175
    %1052 = vmatpush1.bf16.msra.mxu0 %v174
    %1053 = vmatprep.subr.bf16.mxu0 %v179
    %1054 = vmatpush1.bf16.msra.mxu0 %v178
    %1055 = vmatprep.subr.bf16.mxu0 %v183
    %1056 = vmatpush1.bf16.msra.mxu0 %v182
    %1057 = vmatprep.subr.bf16.mxu0 %v187
    %1058 = vmatpush1.bf16.msra.mxu0 %v186
    %1059 = vmatprep.subr.bf16.mxu0 %v191
    %1060 = vmatpush1.bf16.msra.mxu0 %v190
    %1061 = vmatprep.subr.bf16.mxu0 %v195
    %1062 = vmatpush1.bf16.msra.mxu0 %v194
    %1063 = vmatprep.subr.bf16.mxu0 0
    %1064 = vmatpush1.bf16.msra.mxu0 0
    %1065 = vmatprep.subr.bf16.mxu0 0
    %1066 = vmatpush1.bf16.msra.mxu0 0
    %1067 = vmatprep.subr.bf16.mxu0 0
    %1068 = vmatpush1.bf16.msra.mxu0 0
    %1069 = vmatprep.subr.bf16.mxu0 0
    %1070 = vmatpush1.bf16.msra.mxu0 0
    %1071 = vmatprep.subr.bf16.mxu0 0
    %1072 = vmatpush1.bf16.msra.mxu0 0
    %1073 = vmatprep.subr.bf16.mxu0 0
    %1074 = vmatpush1.bf16.msra.mxu0 0
    %1075 = vmatprep.subr.bf16.mxu0 0
    %1076 = vmatpush1.bf16.msra.mxu0 0
    %1077 = vmatprep.subr.bf16.mxu0 0
    %1078 = vmatpush1.bf16.msra.mxu0 0
    %1079 = vmatprep.mubr.bf16.mxu0 0
    %1080 = vmatmul.mubr.bf16.gmra.mrb[0].mxu0 %v1005
    %v1081 = vpop.f32.mrb[0].mxu0
    %v1082 = vadd.f32 0.0, %v1081
    %v1083 = vpop.f32.mrb[0].mxu0
    %v1084 = vadd.f32 0.0, %v1083
    %v1085 = vpop.f32.mrb[0].mxu0
    %v1086 = vpop.f32.mrb[0].mxu0
    %1087 = vdwg.mxu0
    %v1088 = vadd.f32 %v1001, %v1041
    %v1089 = vadd.f32 %v1002, %v1043
    %v1090 = vadd.f32 %v1003, %v1082
    %v1091 = vadd.f32 %v1004, %v1084
    %v1092 = vxor.u32 %v1088, 2147483648
    %v1093 = vmul.f32 %v1092, 1.442695
    %v1094 = vpow.pop %v1093
    %v1095 = vadd.f32 %v1094, 1.0
    %v1096 = vrcp.pop %v1095
    %v1097 = vmul.f32 1.0, %v1096
    %v1098 = vmul.f32 %v1097, %v995
    %v1099 = vxor.u32 %v1089, 2147483648
    %v1100 = vmul.f32 %v1099, 1.442695
    %v1101 = vpow.pop %v1100
    %v1102 = vadd.f32 %v1101, 1.0
    %v1103 = vrcp.pop %v1102
    %v1104 = vmul.f32 1.0, %v1103
    %v1105 = vtanh.pop %v1091
    %v1106 = vmul.f32 %v1104, %v1105
    %v1107 = vadd.f32 %v1098, %v1106
    %v1108 = vxor.u32 %v1090, 2147483648
    %v1109 = vmul.f32 %v1108, 1.442695
    %v1110 = vpow.pop %v1109
    %v1111 = vadd.f32 %v1110, 1.0
    %v1112 = vrcp.pop %v1111
    %v1113 = vmul.f32 1.0, %v1112
    %v1114 = vtanh.pop %v1107
    %v1115 = vmul.f32 %v1113, %v1114
    %s1116 = sadd.s32 %s58, 6
    %v1117 = vstv %s1116
    %vm1118 = vcmp.lt.s32.totalorder %v1117, %v25
    %v1119 = vsel %vm1118, 1, 0
    %1120 = vset.pattern.permute.xlu0 0
    %1121 = vperm.xlu0 %1120, %v1119
    %v1122 = vpop.permute.xlu0 %1121
    %vm1123 = vcmp.eq.s32.totalorder %v1122, 1
    %v1124 = vsel %vm1123, %v1115, %v994
    %v1125 = vsel %vm1123, %v1107, %v995
    %s1126 = scalar_lea.vmem %s3, 48
    %1127 = vst [vmem:[%s1126] sm:$0xff] %v1124
    %s1128 = scalar_lea.vmem %s1, 112
    %v1129 = vld [vmem:[%s1128] sm:$0xff]
    %v1130 = vld [vmem:[%s1128 + $0x8] sm:$0xff]
    %v1131 = vunpack.c.l.bf16 %v1129
    %v1132 = vunpack.c.h.bf16 %v1129
    %v1133 = vunpack.c.l.bf16 %v1130
    %v1134 = vunpack.c.h.bf16 %v1130
    %v1135 = vpack.c.bf16 %v1124, %v1124
    %1136 = vmatprep.subr.bf16.mxu0 %v165
    %1137 = vmatpush1.bf16.msra.mxu0 %v164
    %1138 = vmatprep.subr.bf16.mxu0 %v169
    %1139 = vmatpush1.bf16.msra.mxu0 %v168
    %1140 = vmatprep.subr.bf16.mxu0 %v173
    %1141 = vmatpush1.bf16.msra.mxu0 %v172
    %1142 = vmatprep.subr.bf16.mxu0 %v177
    %1143 = vmatpush1.bf16.msra.mxu0 %v176
    %1144 = vmatprep.subr.bf16.mxu0 %v181
    %1145 = vmatpush1.bf16.msra.mxu0 %v180
    %1146 = vmatprep.subr.bf16.mxu0 %v185
    %1147 = vmatpush1.bf16.msra.mxu0 %v184
    %1148 = vmatprep.subr.bf16.mxu0 %v189
    %1149 = vmatpush1.bf16.msra.mxu0 %v188
    %1150 = vmatprep.subr.bf16.mxu0 %v193
    %1151 = vmatpush1.bf16.msra.mxu0 %v192
    %1152 = vmatprep.subr.bf16.mxu0 0
    %1153 = vmatpush1.bf16.msra.mxu0 0
    %1154 = vmatprep.subr.bf16.mxu0 0
    %1155 = vmatpush1.bf16.msra.mxu0 0
    %1156 = vmatprep.subr.bf16.mxu0 0
    %1157 = vmatpush1.bf16.msra.mxu0 0
    %1158 = vmatprep.subr.bf16.mxu0 0
    %1159 = vmatpush1.bf16.msra.mxu0 0
    %1160 = vmatprep.subr.bf16.mxu0 0
    %1161 = vmatpush1.bf16.msra.mxu0 0
    %1162 = vmatprep.subr.bf16.mxu0 0
    %1163 = vmatpush1.bf16.msra.mxu0 0
    %1164 = vmatprep.subr.bf16.mxu0 0
    %1165 = vmatpush1.bf16.msra.mxu0 0
    %1166 = vmatprep.subr.bf16.mxu0 0
    %1167 = vmatpush1.bf16.msra.mxu0 0
    %1168 = vmatprep.mubr.bf16.mxu0 0
    %1169 = vmatmul.mubr.bf16.gmra.mrb[0].mxu0 %v1135
    %v1170 = vpop.f32.mrb[0].mxu0
    %v1171 = vadd.f32 0.0, %v1170
    %v1172 = vpop.f32.mrb[0].mxu0
    %v1173 = vadd.f32 0.0, %v1172
    %v1174 = vpop.f32.mrb[0].mxu0
    %v1175 = vpop.f32.mrb[0].mxu0
    %1176 = vdwg.mxu0
    %1177 = vmatprep.subr.bf16.mxu0 %v167
    %1178 = vmatpush1.bf16.msra.mxu0 %v166
    %1179 = vmatprep.subr.bf16.mxu0 %v171
    %1180 = vmatpush1.bf16.msra.mxu0 %v170
    %1181 = vmatprep.subr.bf16.mxu0 %v175
    %1182 = vmatpush1.bf16.msra.mxu0 %v174
    %1183 = vmatprep.subr.bf16.mxu0 %v179
    %1184 = vmatpush1.bf16.msra.mxu0 %v178
    %1185 = vmatprep.subr.bf16.mxu0 %v183
    %1186 = vmatpush1.bf16.msra.mxu0 %v182
    %1187 = vmatprep.subr.bf16.mxu0 %v187
    %1188 = vmatpush1.bf16.msra.mxu0 %v186
    %1189 = vmatprep.subr.bf16.mxu0 %v191
    %1190 = vmatpush1.bf16.msra.mxu0 %v190
    %1191 = vmatprep.subr.bf16.mxu0 %v195
    %1192 = vmatpush1.bf16.msra.mxu0 %v194
    %1193 = vmatprep.subr.bf16.mxu0 0
    %1194 = vmatpush1.bf16.msra.mxu0 0
    %1195 = vmatprep.subr.bf16.mxu0 0
    %1196 = vmatpush1.bf16.msra.mxu0 0
    %1197 = vmatprep.subr.bf16.mxu0 0
    %1198 = vmatpush1.bf16.msra.mxu0 0
    %1199 = vmatprep.subr.bf16.mxu0 0
    %1200 = vmatpush1.bf16.msra.mxu0 0
    %1201 = vmatprep.subr.bf16.mxu0 0
    %1202 = vmatpush1.bf16.msra.mxu0 0
    %1203 = vmatprep.subr.bf16.mxu0 0
    %1204 = vmatpush1.bf16.msra.mxu0 0
    %1205 = vmatprep.subr.bf16.mxu0 0
    %1206 = vmatpush1.bf16.msra.mxu0 0
    %1207 = vmatprep.subr.bf16.mxu0 0
    %1208 = vmatpush1.bf16.msra.mxu0 0
    %1209 = vmatprep.mubr.bf16.mxu0 0
    %1210 = vmatmul.mubr.bf16.gmra.mrb[0].mxu0 %v1135
    %v1211 = vpop.f32.mrb[0].mxu0
    %v1212 = vadd.f32 0.0, %v1211
    %v1213 = vpop.f32.mrb[0].mxu0
    %v1214 = vadd.f32 0.0, %v1213
    %v1215 = vpop.f32.mrb[0].mxu0
    %v1216 = vpop.f32.mrb[0].mxu0
    %1217 = vdwg.mxu0
    %v1218 = vadd.f32 %v1131, %v1171
    %v1219 = vadd.f32 %v1132, %v1173
    %v1220 = vadd.f32 %v1133, %v1212
    %v1221 = vadd.f32 %v1134, %v1214
    %v1222 = vxor.u32 %v1218, 2147483648
    %v1223 = vmul.f32 %v1222, 1.442695
    %v1224 = vpow.pop %v1223
    %v1225 = vadd.f32 %v1224, 1.0
    %v1226 = vrcp.pop %v1225
    %v1227 = vmul.f32 1.0, %v1226
    %v1228 = vmul.f32 %v1227, %v1125
    %v1229 = vxor.u32 %v1219, 2147483648
    %v1230 = vmul.f32 %v1229, 1.442695
    %v1231 = vpow.pop %v1230
    %v1232 = vadd.f32 %v1231, 1.0
    %v1233 = vrcp.pop %v1232
    %v1234 = vmul.f32 1.0, %v1233
    %v1235 = vtanh.pop %v1221
    %v1236 = vmul.f32 %v1234, %v1235
    %v1237 = vadd.f32 %v1228, %v1236
    %v1238 = vxor.u32 %v1220, 2147483648
    %v1239 = vmul.f32 %v1238, 1.442695
    %v1240 = vpow.pop %v1239
    %v1241 = vadd.f32 %v1240, 1.0
    %v1242 = vrcp.pop %v1241
    %v1243 = vmul.f32 1.0, %v1242
    %v1244 = vtanh.pop %v1237
    %v1245 = vmul.f32 %v1243, %v1244
    %s1246 = sadd.s32 %s58, 7
    %v1247 = vstv %s1246
    %vm1248 = vcmp.lt.s32.totalorder %v1247, %v25
    %v1249 = vsel %vm1248, 1, 0
    %1250 = vset.pattern.permute.xlu0 0
    %1251 = vperm.xlu0 %1250, %v1249
    %v1252 = vpop.permute.xlu0 %1251
    %vm1253 = vcmp.eq.s32.totalorder %v1252, 1
    %v1254 = vsel %vm1253, %v1245, %v1124
    %v1255 = vsel %vm1253, %v1237, %v1125
    %s1256 = scalar_lea.vmem %s3, 56
    %1257 = vst [vmem:[%s1256] sm:$0xff] %v1254
    %1258 = vst [vmem:[#allocation2] sm:$0xff] %v1254
    %1259 = vst [vmem:[#allocation3] sm:$0xff] %v1255
    // Predicated region
    $region18: #{rnn_forward.2} parent=1 // pred_check
      %p1260 = pneg %p19
    $region19: #{rnn_forward.2} parent=1 // pred_check_branch
      %1262 = sbr.rel (%p1260) target = $region21
    $region20: #{rnn_forward.2} parent=1 // pred_region
      %1263 = vst [vmem:[%s4] sm:$0xff] %v1254
      %1264 = vst [vmem:[#allocation4] sm:$0xff] %v1255
    $region21: #{rnn_forward.2} parent=1 // pred_fallthru
      _
    // Predicated region
    $region22: #{rnn_forward.2} parent=1 // pred_check
      _
    $region23: #{rnn_forward.2} parent=1 // pred_check_branch
      %1266 = sbr.rel (0) target = $region25
    $region24: #{rnn_forward.2} parent=1 // pred_region
      _
    $region25: #{rnn_forward.2} parent=1 // pred_fallthru
      _
    // Predicated region
    $region26: #{rnn_forward.2} parent=1 // pred_check
      _
    $region27: #{rnn_forward.2} parent=1 // pred_check_branch
      %1268 = sbr.rel (0) target = $region29
    $region28: #{rnn_forward.2} parent=1 // pred_region
      _
    $region29: #{rnn_forward.2} parent=1 // pred_fallthru
      _
    // Predicated region
    $region30: #{rnn_forward.2} parent=1 // pred_check
      _
    $region31: #{rnn_forward.2} parent=1 // pred_check_branch
      %1270 = sbr.rel (0) target = $region33
    $region32: #{rnn_forward.2} parent=1 // pred_region
      %s1272 = ssub.s32 128, 128
      %1273 = vsyncadd [#allocation5], %s1272
      %s1275 = sshll.u32 [#allocation4], 4
      %s1276 = int_to_ptr.vmem [resolvable:$true] %s1275
      %1278 = dma.vmem_to_hbm [thread:$0]  %s1276, 128, %s5, [#allocation5]
    $region33: #{rnn_forward.2} parent=1 // pred_fallthru
      _
    // Predicated region
    $region34: #{rnn_forward.2} parent=1 // pred_check
      _
    $region35: #{rnn_forward.2} parent=1 // pred_check_branch
      %1280 = sbr.rel (0) target = $region37
    $region36: #{rnn_forward.2} parent=1 // pred_region
      _
    $region37: #{rnn_forward.2} parent=1 // pred_fallthru
      _
    // Predicated region
    $region38: #{rnn_forward.2} parent=1 // pred_check
      _
    $region39: #{rnn_forward.2} parent=1 // pred_check_branch
      %1282 = sbr.rel (0) target = $region41
    $region40: #{rnn_forward.2} parent=1 // pred_region
      _
    $region41: #{rnn_forward.2} parent=1 // pred_fallthru
      _
    // Predicated region
    $region42: #{rnn_forward.2} parent=1 // pred_check
      _
    $region43: #{rnn_forward.2} parent=1 // pred_check_branch
      %1284 = sbr.rel (0) target = $region45
    $region44: #{rnn_forward.2} parent=1 // pred_region
      %1285 = dma.done [#allocation5], 128
    $region45: #{rnn_forward.2} parent=1 // pred_fallthru
      _
    %1286 = vsyncpa [#allocation5], 1

</llo_original>
